<compile_context>
chip_gen: v6e
topology: v6e:2x2x1
jax: 0.10.0
libtpu: 0.0.40
codegen_flags: <defaults>
</compile_context>

<pallas_src>
import functools

import jax
import jax.numpy as jnp
from jax.experimental import pallas as pl
from jax.experimental.pallas import tpu as pltpu

LANE = 128


def _round_up(x, m):
    return ((x + m - 1) // m) * m


# ---------------------------------------------------------------------------
# Fused all-layers Pallas kernel (grid axis = layer)
# ---------------------------------------------------------------------------
def _gnn_vn_fused_kernel(h0_ref, vn0_ref, batch_col_ref, batch_row_ref,
                         src_col_ref, dst_row_ref, edge_attr_ref,
                         eps_ref, edge_w_ref, edge_b_ref,
                         w1_ref, b1_ref, w2_ref, b2_ref,
                         vnw1_ref, vnb1_ref, vnw2_ref, vnb2_ref,
                         out_ref,
                         *scratch, residual, jk_sum):
    if jk_sum:
        (h_scr, vn_scr, oh_ng_scr, oh_gn_scr,
         oh_src_scr, oh_dst_scr, jk_scr) = scratch
    else:
        (h_scr, vn_scr, oh_ng_scr, oh_gn_scr,
         oh_src_scr, oh_dst_scr) = scratch
        jk_scr = None

    f32, bf16, i32 = jnp.float32, jnp.bfloat16, jnp.int32
    layer = pl.program_id(0)
    is_last = layer == pl.num_programs(0) - 1

    Np, Dp = h_scr.shape
    Gp = vn_scr.shape[0]
    Ep = src_col_ref.shape[0]

    # ---- layer 0: cache layer-invariant index one-hots, seed h / vn ---------
    @pl.when(layer == 0)
    def _init():
        oh_ng_scr[...] = (batch_col_ref[...] ==
                          jax.lax.broadcasted_iota(i32, (Np, Gp), 1)).astype(f32)
        oh_gn_scr[...] = (jax.lax.broadcasted_iota(i32, (Gp, Np), 0) ==
                          batch_row_ref[...]).astype(f32)
        oh_src_scr[...] = (src_col_ref[...] ==
                           jax.lax.broadcasted_iota(i32, (Ep, Np), 1)
                           ).astype(f32).astype(bf16)
        oh_dst_scr[...] = (jax.lax.broadcasted_iota(i32, (Np, Ep), 0) ==
                           dst_row_ref[...]).astype(f32).astype(bf16)
        h_scr[...] = h0_ref[...]
        vn_scr[...] = vn0_ref[...]
        if jk_sum:
            jk_scr[...] = jnp.zeros_like(jk_scr)

    h = h_scr[...]
    vn = vn_scr[...]

    # h_in = h + virtualnode_embedding[batch]   (one-hot gather, f32, exact)
    h_in = h + jnp.dot(oh_ng_scr[...], vn, preferred_element_type=f32)
    h_in_b = h_in.astype(bf16)

    # ---- GINConv -------------------------------------------------------------
    # edge_embedding = edge_encoder(edge_attr)
    e_emb = jnp.dot(edge_attr_ref[...], edge_w_ref[...],
                    preferred_element_type=f32) + edge_b_ref[...]
    # x_j = h_in[src]  (one-hot gather on the bf16 MXU path, f32 accumulation)
    x_j = jnp.dot(oh_src_scr[...], h_in_b, preferred_element_type=f32)
    # padded edges (src/dst = -1): x_j = 0, msg = relu(edge_b); they are dropped
    # below because their destination one-hot column is all zero.
    msg = jnp.maximum(x_j + e_emb, 0.0)
    # scatter-add of messages to destination nodes
    aggr = jnp.dot(oh_dst_scr[...], msg.astype(bf16), preferred_element_type=f32)

    pre = eps_ref[...] * h_in + aggr            # (1 + eps) * x + sum(messages)
    hid = jnp.maximum(
        jnp.dot(pre.astype(bf16), w1_ref[...], preferred_element_type=f32)
        + b1_ref[...], 0.0)                     # Linear -> (inner BN folded) -> ReLU
    h_lin = (jnp.dot(hid.astype(bf16), w2_ref[...], preferred_element_type=f32)
             + b2_ref[...])                     # Linear -> (outer per-layer BN folded)
    h_act = jnp.maximum(h_lin, 0.0)             # ReLU applied on all but the last layer
    if residual:
        h_lin = h_lin + h_in
        h_act = h_act + h_in
    # dropout: eval-mode identity

    if jk_sum:
        jk_scr[...] = jk_scr[...] + h_in

    # ---- all but last layer: hand h to next layer + virtual-node MLP update --
    @pl.when(jnp.logical_not(is_last))
    def _not_last():
        h_scr[...] = h_act
        pooled = jnp.dot(oh_gn_scr[...], h_in, preferred_element_type=f32) + vn
        t = jnp.maximum(
            jnp.dot(pooled.astype(bf16), vnw1_ref[...], preferred_element_type=f32)
            + vnb1_ref[...], 0.0)
        t = jnp.maximum(
            jnp.dot(t.astype(bf16), vnw2_ref[...], preferred_element_type=f32)
            + vnb2_ref[...], 0.0)
        vn_scr[...] = (vn + t) if residual else t

    # ---- last layer: emit the node representation -----------------------------
    @pl.when(is_last)
    def _finalize():
        out_ref[...] = (jk_scr[...] + h_lin) if jk_sum else h_lin


# ---------------------------------------------------------------------------
# Parameter preparation (done ONCE per parameter set): fold eval-mode BatchNorm
# into the preceding Linears, pad to 128 lanes, stack along a leading layer axis.
# ---------------------------------------------------------------------------
def _pad2(a, rows, cols):
    return jnp.pad(a, ((0, rows - a.shape[0]), (0, cols - a.shape[1])))


def _pad_row(v, cols):
    return jnp.pad(v, (0, cols - v.shape[0])).reshape(1, cols).astype(jnp.float32)


def _fold_bn(w, b, gamma, beta, mean, var, eps=1e-5):
    """Fold eval-mode BatchNorm1d into the preceding Linear (y = x @ w + b)."""
    scale = gamma / jnp.sqrt(var + eps)
    return w * scale[None, :], b * scale + (beta - mean * scale)


def prepare_weights(params, num_layer, emb_dim):
    # TODO(synk): training-mode BatchNorm batch statistics / dropout masks are not
    # representable with folded weights; this prep is eval-mode only.
    D = emb_dim
    Dp = _round_up(D, LANE)
    Hp = _round_up(2 * D, LANE)
    bf16, f32 = jnp.bfloat16, jnp.float32

    eps_l, ew_l, eb_l, w1_l, b1_l, w2_l, b2_l = [], [], [], [], [], [], []
    for layer in range(num_layer):
        lp = params["layers"][layer]
        w1, b1 = _fold_bn(lp["mlp_w1"], lp["mlp_b1"], lp["mlp_bn_g"], lp["mlp_bn_b"],
                          lp["mlp_bn_rm"], lp["mlp_bn_rv"])
        w2, b2 = _fold_bn(lp["mlp_w2"], lp["mlp_b2"], lp["bn_g"], lp["bn_b"],
                          lp["bn_rm"], lp["bn_rv"])
        eps_l.append(jnp.full((1, Dp), 1.0, f32) + lp["eps"])        # (1 + eps)
        ew_l.append(_pad2(lp["edge_w"], 8, Dp).astype(f32))
        eb_l.append(_pad_row(lp["edge_b"], Dp))
        w1_l.append(_pad2(w1, Dp, Hp).astype(bf16))
        b1_l.append(_pad_row(b1, Hp))
        w2_l.append(_pad2(w2, Hp, Dp).astype(bf16))
        b2_l.append(_pad_row(b2, Dp))

    vnw1_l, vnb1_l, vnw2_l, vnb2_l = [], [], [], []
    for layer in range(num_layer - 1):
        vp = params["vn_mlps"][layer]
        w1, b1 = _fold_bn(vp["w1"], vp["b1"], vp["bn1_g"], vp["bn1_b"],
                          vp["bn1_rm"], vp["bn1_rv"])
        w2, b2 = _fold_bn(vp["w2"], vp["b2"], vp["bn2_g"], vp["bn2_b"],
                          vp["bn2_rm"], vp["bn2_rv"])
        vnw1_l.append(_pad2(w1, Dp, Hp).astype(bf16))
        vnb1_l.append(_pad_row(b1, Hp))
        vnw2_l.append(_pad2(w2, Hp, Dp).astype(bf16))
        vnb2_l.append(_pad_row(b2, Dp))
    # zero (never-used, gated by pl.when) vn-MLP slot for the last layer
    vnw1_l.append(jnp.zeros((Dp, Hp), bf16))
    vnb1_l.append(jnp.zeros((1, Hp), f32))
    vnw2_l.append(jnp.zeros((Hp, Dp), bf16))
    vnb2_l.append(jnp.zeros((1, Dp), f32))

    return {
        "node_emb": params["node_emb"].astype(f32),
        "vn_emb": params["vn_emb"].astype(f32),
        "eps": jnp.stack(eps_l), "edge_w": jnp.stack(ew_l), "edge_b": jnp.stack(eb_l),
        "w1": jnp.stack(w1_l), "b1": jnp.stack(b1_l),
        "w2": jnp.stack(w2_l), "b2": jnp.stack(b2_l),
        "vnw1": jnp.stack(vnw1_l), "vnb1": jnp.stack(vnb1_l),
        "vnw2": jnp.stack(vnw2_l), "vnb2": jnp.stack(vnb2_l),
    }


# ---------------------------------------------------------------------------
# Forward pass (jitted end to end; num_graphs / residual / JK are static)
# ---------------------------------------------------------------------------
@functools.partial(jax.jit, static_argnames=("num_graphs", "residual", "jk"))
def gnn_node_virtualnode_forward(weights, x_idx, edge_index, edge_attr, batch,
                                 *, num_graphs, residual=False, jk="last"):
    if jk not in ("last", "sum"):
        raise ValueError(jk)
    N = x_idx.shape[0]
    E = edge_attr.shape[0]
    D = weights["node_emb"].shape[1]
    L = weights["w1"].shape[0]
    Dp = weights["w1"].shape[1]
    Np = _round_up(N, 16)
    Ep = _round_up(E, 16)
    Gp = _round_up(max(num_graphs, 8), 8)
    f32 = jnp.float32

    # ---- graph-dependent glue (compiled under jit, no eager dispatch) --------
    batch_i = jnp.pad(batch.astype(jnp.int32), (0, Np - N), constant_values=-1)
    src_i = jnp.pad(edge_index[0].astype(jnp.int32), (0, Ep - E), constant_values=-1)
    dst_i = jnp.pad(edge_index[1].astype(jnp.int32), (0, Ep - E), constant_values=-1)
    batch_col = batch_i.reshape(Np, 1)
    batch_row = batch_i.reshape(1, Np)
    src_col = src_i.reshape(Ep, 1)
    dst_row = dst_i.reshape(1, Ep)
    edge_attr_p = jnp.zeros((Ep, 8), f32).at[:E, :7].set(edge_attr.astype(f32))

    # node_encoder / virtualnode_embedding lookups
    h0 = jnp.zeros((Np, Dp), f32).at[:N, :D].set(
        weights["node_emb"][x_idx.astype(jnp.int32)])
    vn0 = jnp.zeros((Gp, Dp), f32).at[:, :D].set(
        jnp.broadcast_to(weights["vn_emb"][0], (Gp, D)))

    jk_sum = (jk == "sum")
    kernel = functools.partial(_gnn_vn_fused_kernel,
                               residual=residual, jk_sum=jk_sum)

    def inv(a):                       # layer-invariant input (fetched once)
        return pl.BlockSpec(a.shape, lambda l: (0,) * a.ndim)

    def per_layer(a):                 # stacked per-layer weights, layer dim squeezed
        return pl.BlockSpec((None,) + a.shape[1:], lambda l: (l, 0, 0))

    weight_keys = ("eps", "edge_w", "edge_b", "w1", "b1", "w2", "b2",
                   "vnw1", "vnb1", "vnw2", "vnb2")
    inputs = [h0, vn0, batch_col, batch_row, src_col, dst_row, edge_attr_p]
    in_specs = [inv(a) for a in inputs]
    inputs += [weights[k] for k in weight_keys]
    in_specs += [per_layer(weights[k]) for k in weight_keys]

    # TODO(synk): for large graphs (Ep*Np one-hots approaching VMEM capacity,
    # especially v7x's 64 MiB) an edge-block grid axis with an aggr accumulator
    # would be required; at these sizes a single resident tile is optimal.
    scratch = [
        pltpu.VMEM((Np, Dp), f32),          # h  (resident across layers)
        pltpu.VMEM((Gp, Dp), f32),          # vn (resident across layers)
        pltpu.VMEM((Np, Gp), f32),          # node->graph one-hot (vn gather)
        pltpu.VMEM((Gp, Np), f32),          # graph->node one-hot (global_add_pool)
        pltpu.VMEM((Ep, Np), jnp.bfloat16),  # edge-source one-hot (x_j gather)
        pltpu.VMEM((Np, Ep), jnp.bfloat16),  # destination one-hot (scatter-add)
    ]
    if jk_sum:
        scratch.append(pltpu.VMEM((Np, Dp), f32))   # JK sum accumulator

    out = pl.pallas_call(
        kernel,
        grid=(L,),
        out_shape=jax.ShapeDtypeStruct((Np, Dp), f32),
        in_specs=in_specs,
        out_specs=pl.BlockSpec((Np, Dp), lambda l: (0, 0)),
        scratch_shapes=scratch,
        compiler_params=pltpu.CompilerParams(
            dimension_semantics=("arbitrary",),
            vmem_limit_bytes=64 * 1024 * 1024),
    )(*inputs)
    return out[:N, :D]


# ---------------------------------------------------------------------------
# Deterministic parameter construction (shapes from the PyTorch __init__)
# ---------------------------------------------------------------------------
def init_params(key, num_layer, emb_dim):
    keys = iter(jax.random.split(key, 256))

    def dense(shape, scale=0.1):
        return scale * jax.random.normal(next(keys), shape, jnp.float32)

    params = {
        "node_emb": dense((1, emb_dim)),                 # Embedding(1, D)
        "vn_emb": jnp.zeros((1, emb_dim), jnp.float32),  # constant_(0)
        "layers": [],
        "vn_mlps": [],
    }
    for _ in range(num_layer):
        params["layers"].append({
            "edge_w": dense((7, emb_dim)),               # Linear(7, D), stored [in, out]
            "edge_b": dense((emb_dim,)),
            "eps": jnp.zeros((), jnp.float32),           # nn.Parameter([0])
            "mlp_w1": dense((emb_dim, 2 * emb_dim)),
            "mlp_b1": dense((2 * emb_dim,)),
            "mlp_bn_g": jnp.ones((2 * emb_dim,), jnp.float32),
            "mlp_bn_b": jnp.zeros((2 * emb_dim,), jnp.float32),
            "mlp_bn_rm": jnp.zeros((2 * emb_dim,), jnp.float32),
            "mlp_bn_rv": jnp.ones((2 * emb_dim,), jnp.float32),
            "mlp_w2": dense((2 * emb_dim, emb_dim)),
            "mlp_b2": dense((emb_dim,)),
            "bn_g": jnp.ones((emb_dim,), jnp.float32),
            "bn_b": jnp.zeros((emb_dim,), jnp.float32),
            "bn_rm": jnp.zeros((emb_dim,), jnp.float32),
            "bn_rv": jnp.ones((emb_dim,), jnp.float32),
        })
    for _ in range(num_layer - 1):
        params["vn_mlps"].append({
            "w1": dense((emb_dim, 2 * emb_dim)),
            "b1": dense((2 * emb_dim,)),
            "bn1_g": jnp.ones((2 * emb_dim,), jnp.float32),
            "bn1_b": jnp.zeros((2 * emb_dim,), jnp.float32),
            "bn1_rm": jnp.zeros((2 * emb_dim,), jnp.float32),
            "bn1_rv": jnp.ones((2 * emb_dim,), jnp.float32),
            "w2": dense((2 * emb_dim, emb_dim)),
            "b2": dense((emb_dim,)),
            "bn2_g": jnp.ones((emb_dim,), jnp.float32),
            "bn2_b": jnp.zeros((emb_dim,), jnp.float32),
            "bn2_rm": jnp.zeros((emb_dim,), jnp.float32),
            "bn2_rv": jnp.ones((emb_dim,), jnp.float32),
        })
    return params


if __name__ == "__main__":
    key = jax.random.PRNGKey(0)
    kx, ke, ka, kp = jax.random.split(key, 4)

    num_layer = 2
    emb_dim = 32
    N, E, num_graphs = 16, 24, 2
    # batched_data: node indices (Embedding(1, D)), edges, 7-dim edge features,
    # graph assignment (2 graphs)
    x_idx = jnp.zeros((N,), jnp.int32)
    edge_index = jax.random.randint(ke, (2, E), 0, N, dtype=jnp.int32)
    edge_attr = jax.random.uniform(ka, (E, 7), jnp.float32)
    batch = jnp.concatenate([jnp.zeros((N // 2,), jnp.int32),
                             jnp.ones((N - N // 2,), jnp.int32)])

    params = init_params(kp, num_layer, emb_dim)
    # Hoisted once per parameter set: BN folding, 128-lane padding, layer stacking.
    weights = prepare_weights(params, num_layer, emb_dim)

    # TODO(synk): training-mode dropout (RNG masking) and BatchNorm batch-statistic
    # updates are not implemented; forward is eval-mode deterministic semantics.
    out = gnn_node_virtualnode_forward(weights, x_idx, edge_index, edge_attr, batch,
                                       num_graphs=num_graphs, residual=False,
                                       jk="last")
    out = jax.block_until_ready(out)

    assert out.shape == (N, emb_dim), out.shape
    assert bool(jnp.all(jnp.isfinite(out)))
    print("KERNEL_OK")
</pallas_src>

<mosaic_0001>
module attributes {stable_mosaic.version = 11 : i64} {
  func.func @_gnn_vn_fused_kernel(%arg0: i32, %arg1: memref<16x128xf32, #tpu.memory_space<vmem>>, %arg2: memref<8x128xf32, #tpu.memory_space<vmem>>, %arg3: memref<16x1xi32, #tpu.memory_space<vmem>>, %arg4: memref<1x16xi32, #tpu.memory_space<vmem>>, %arg5: memref<32x1xi32, #tpu.memory_space<vmem>>, %arg6: memref<1x32xi32, #tpu.memory_space<vmem>>, %arg7: memref<32x8xf32, #tpu.memory_space<vmem>>, %arg8: memref<1x1x128xf32, #tpu.memory_space<vmem>>, %arg9: memref<1x8x128xf32, #tpu.memory_space<vmem>>, %arg10: memref<1x1x128xf32, #tpu.memory_space<vmem>>, %arg11: memref<1x128x128xbf16, #tpu.memory_space<vmem>>, %arg12: memref<1x1x128xf32, #tpu.memory_space<vmem>>, %arg13: memref<1x128x128xbf16, #tpu.memory_space<vmem>>, %arg14: memref<1x1x128xf32, #tpu.memory_space<vmem>>, %arg15: memref<1x128x128xbf16, #tpu.memory_space<vmem>>, %arg16: memref<1x1x128xf32, #tpu.memory_space<vmem>>, %arg17: memref<1x128x128xbf16, #tpu.memory_space<vmem>>, %arg18: memref<1x1x128xf32, #tpu.memory_space<vmem>>, %arg19: memref<16x128xf32, #tpu.memory_space<vmem>>, %arg20: memref<16x128xf32, #tpu.memory_space<vmem>>, %arg21: memref<8x128xf32, #tpu.memory_space<vmem>>, %arg22: memref<16x8xf32, #tpu.memory_space<vmem>>, %arg23: memref<8x16xf32, #tpu.memory_space<vmem>>, %arg24: memref<32x16xbf16, #tpu.memory_space<vmem>>, %arg25: memref<16x32xbf16, #tpu.memory_space<vmem>>) attributes {dimension_semantics = [#tpu.dimension_semantics<arbitrary>], iteration_bounds = array<i64: 2>, scalar_prefetch = 0 : i64, scratch_operands = 6 : i64, tpu.core_type = #tpu.core_type<tc>, window_params = [{pipeline_mode = #tpu.pipeline_mode<synchronous>, transform_indices = @transform_0, window_bounds = array<i64: 16, 128>}, {pipeline_mode = #tpu.pipeline_mode<synchronous>, transform_indices = @transform_1, window_bounds = array<i64: 8, 128>}, {pipeline_mode = #tpu.pipeline_mode<synchronous>, transform_indices = @transform_2, window_bounds = array<i64: 16, 1>}, {pipeline_mode = #tpu.pipeline_mode<synchronous>, transform_indices = @transform_3, window_bounds = array<i64: 1, 16>}, {pipeline_mode = #tpu.pipeline_mode<synchronous>, transform_indices = @transform_4, window_bounds = array<i64: 32, 1>}, {pipeline_mode = #tpu.pipeline_mode<synchronous>, transform_indices = @transform_5, window_bounds = array<i64: 1, 32>}, {pipeline_mode = #tpu.pipeline_mode<synchronous>, transform_indices = @transform_6, window_bounds = array<i64: 32, 8>}, {transform_indices = @transform_7, window_bounds = array<i64: 1, 1, 128>}, {transform_indices = @transform_8, window_bounds = array<i64: 1, 8, 128>}, {transform_indices = @transform_9, window_bounds = array<i64: 1, 1, 128>}, {transform_indices = @transform_10, window_bounds = array<i64: 1, 128, 128>}, {transform_indices = @transform_11, window_bounds = array<i64: 1, 1, 128>}, {transform_indices = @transform_12, window_bounds = array<i64: 1, 128, 128>}, {transform_indices = @transform_13, window_bounds = array<i64: 1, 1, 128>}, {transform_indices = @transform_14, window_bounds = array<i64: 1, 128, 128>}, {transform_indices = @transform_15, window_bounds = array<i64: 1, 1, 128>}, {transform_indices = @transform_16, window_bounds = array<i64: 1, 128, 128>}, {transform_indices = @transform_17, window_bounds = array<i64: 1, 1, 128>}, {pipeline_mode = #tpu.pipeline_mode<synchronous>, transform_indices = @transform_18, window_bounds = array<i64: 16, 128>}]} {
    %c1_i32 = arith.constant 1 : i32
    %0 = arith.cmpi eq, %arg0, %c1_i32 : i32
    %c0_i32 = arith.constant 0 : i32
    %1 = arith.cmpi eq, %arg0, %c0_i32 : i32
    %2 = arith.extui %1 : i1 to i32
    %c0_i32_0 = arith.constant 0 : i32
    %3 = arith.cmpi ne, %2, %c0_i32_0 : i32
    scf.if %3 {
      %c0_43 = arith.constant 0 : index
      %c0_44 = arith.constant 0 : index
      %56 = vector.load %arg3[%c0_43, %c0_44] : memref<16x1xi32, #tpu.memory_space<vmem>>, vector<16x1xi32>
      %57 = tpu.iota {dimensions = array<i32: 1>} : vector<16x8xi32>
      %58 = vector.broadcast %56 : vector<16x1xi32> to vector<16x8xi32>
      %59 = arith.cmpi eq, %58, %57 : vector<16x8xi32>
      %60 = arith.extui %59 : vector<16x8xi1> to vector<16x8xi32>
      %61 = arith.sitofp %60 : vector<16x8xi32> to vector<16x8xf32>
      %c0_45 = arith.constant 0 : index
      %c0_46 = arith.constant 0 : index
      %62 = vector.load %arg22[%c0_45, %c0_46] : memref<16x8xf32, #tpu.memory_space<vmem>>, vector<16x8xf32>
      tpu.vector_store %arg22[%c0_45, %c0_46], %61 {strides = array<i32>} : memref<16x8xf32, #tpu.memory_space<vmem>>, vector<16x8xf32>,
      %63 = tpu.iota {dimensions = array<i32: 0>} : vector<8x16xi32>
      %c0_47 = arith.constant 0 : index
      %c0_48 = arith.constant 0 : index
      %64 = vector.load %arg4[%c0_47, %c0_48] : memref<1x16xi32, #tpu.memory_space<vmem>>, vector<1x16xi32>
      %65 = vector.broadcast %64 : vector<1x16xi32> to vector<8x16xi32>
      %66 = arith.cmpi eq, %63, %65 : vector<8x16xi32>
      %67 = arith.extui %66 : vector<8x16xi1> to vector<8x16xi32>
      %68 = arith.sitofp %67 : vector<8x16xi32> to vector<8x16xf32>
      %c0_49 = arith.constant 0 : index
      %c0_50 = arith.constant 0 : index
      %69 = vector.load %arg23[%c0_49, %c0_50] : memref<8x16xf32, #tpu.memory_space<vmem>>, vector<8x16xf32>
      tpu.vector_store %arg23[%c0_49, %c0_50], %68 {strides = array<i32>} : memref<8x16xf32, #tpu.memory_space<vmem>>, vector<8x16xf32>,
      %c0_51 = arith.constant 0 : index
      %c0_52 = arith.constant 0 : index
      %70 = vector.load %arg5[%c0_51, %c0_52] : memref<32x1xi32, #tpu.memory_space<vmem>>, vector<32x1xi32>
      %71 = tpu.iota {dimensions = array<i32: 1>} : vector<32x16xi32>
      %72 = vector.broadcast %70 : vector<32x1xi32> to vector<32x16xi32>
      %73 = arith.cmpi eq, %72, %71 : vector<32x16xi32>
      %74 = arith.extui %73 : vector<32x16xi1> to vector<32x16xi32>
      %75 = arith.sitofp %74 : vector<32x16xi32> to vector<32x16xf32>
      %76 = arith.truncf %75 : vector<32x16xf32> to vector<32x16xbf16>
      %c0_53 = arith.constant 0 : index
      %c0_54 = arith.constant 0 : index
      %77 = vector.load %arg24[%c0_53, %c0_54] : memref<32x16xbf16, #tpu.memory_space<vmem>>, vector<32x16xbf16>
      tpu.vector_store %arg24[%c0_53, %c0_54], %76 {strides = array<i32>} : memref<32x16xbf16, #tpu.memory_space<vmem>>, vector<32x16xbf16>,
      %78 = tpu.iota {dimensions = array<i32: 0>} : vector<16x32xi32>
      %c0_55 = arith.constant 0 : index
      %c0_56 = arith.constant 0 : index
      %79 = vector.load %arg6[%c0_55, %c0_56] : memref<1x32xi32, #tpu.memory_space<vmem>>, vector<1x32xi32>
      %80 = vector.broadcast %79 : vector<1x32xi32> to vector<16x32xi32>
      %81 = arith.cmpi eq, %78, %80 : vector<16x32xi32>
      %82 = arith.extui %81 : vector<16x32xi1> to vector<16x32xi32>
      %83 = arith.sitofp %82 : vector<16x32xi32> to vector<16x32xf32>
      %84 = arith.truncf %83 : vector<16x32xf32> to vector<16x32xbf16>
      %c0_57 = arith.constant 0 : index
      %c0_58 = arith.constant 0 : index
      %85 = vector.load %arg25[%c0_57, %c0_58] : memref<16x32xbf16, #tpu.memory_space<vmem>>, vector<16x32xbf16>
      tpu.vector_store %arg25[%c0_57, %c0_58], %84 {strides = array<i32>} : memref<16x32xbf16, #tpu.memory_space<vmem>>, vector<16x32xbf16>,
      %c0_59 = arith.constant 0 : index
      %c0_60 = arith.constant 0 : index
      %86 = vector.load %arg1[%c0_59, %c0_60] : memref<16x128xf32, #tpu.memory_space<vmem>>, vector<16x128xf32>
      %c0_61 = arith.constant 0 : index
      %c0_62 = arith.constant 0 : index
      %87 = vector.load %arg20[%c0_61, %c0_62] : memref<16x128xf32, #tpu.memory_space<vmem>>, vector<16x128xf32>
      tpu.vector_store %arg20[%c0_61, %c0_62], %86 {strides = array<i32>} : memref<16x128xf32, #tpu.memory_space<vmem>>, vector<16x128xf32>,
      %c0_63 = arith.constant 0 : index
      %c0_64 = arith.constant 0 : index
      %88 = vector.load %arg2[%c0_63, %c0_64] : memref<8x128xf32, #tpu.memory_space<vmem>>, vector<8x128xf32>
      %c0_65 = arith.constant 0 : index
      %c0_66 = arith.constant 0 : index
      %89 = vector.load %arg21[%c0_65, %c0_66] : memref<8x128xf32, #tpu.memory_space<vmem>>, vector<8x128xf32>
      tpu.vector_store %arg21[%c0_65, %c0_66], %88 {strides = array<i32>} : memref<8x128xf32, #tpu.memory_space<vmem>>, vector<8x128xf32>,
    } else {
    }
    %c0 = arith.constant 0 : index
    %c0_1 = arith.constant 0 : index
    %4 = vector.load %arg20[%c0, %c0_1] : memref<16x128xf32, #tpu.memory_space<vmem>>, vector<16x128xf32>
    %c0_2 = arith.constant 0 : index
    %c0_3 = arith.constant 0 : index
    %5 = vector.load %arg21[%c0_2, %c0_3] : memref<8x128xf32, #tpu.memory_space<vmem>>, vector<8x128xf32>
    %c0_4 = arith.constant 0 : index
    %c0_5 = arith.constant 0 : index
    %6 = vector.load %arg22[%c0_4, %c0_5] : memref<16x8xf32, #tpu.memory_space<vmem>>, vector<16x8xf32>
    %cst = arith.constant dense<0.000000e+00> : vector<16x128xf32>
    %7 = tpu.matmul %6, %5, %cst {dimension_numbers = #tpu.dot_dimension_numbers<[1], [0], [0], [1], [0, 0, 1, 1], [], []>} : vector<16x8xf32>, vector<8x128xf32>, vector<16x128xf32> -> vector<16x128xf32>
    %8 = arith.addf %4, %7 : vector<16x128xf32>
    %9 = arith.truncf %8 : vector<16x128xf32> to vector<16x128xbf16>
    %c0_6 = arith.constant 0 : index
    %c0_7 = arith.constant 0 : index
    %10 = vector.load %arg7[%c0_6, %c0_7] : memref<32x8xf32, #tpu.memory_space<vmem>>, vector<32x8xf32>
    %c0_8 = arith.constant 0 : index
    %c0_9 = arith.constant 0 : index
    %c0_10 = arith.constant 0 : index
    %11 = vector.load %arg9[%c0_8, %c0_9, %c0_10] : memref<1x8x128xf32, #tpu.memory_space<vmem>>, vector<1x8x128xf32>
    %12 = vector.shape_cast %11 : vector<1x8x128xf32> to vector<8x128xf32>
    %cst_11 = arith.constant dense<0.000000e+00> : vector<32x128xf32>
    %13 = tpu.matmul %10, %12, %cst_11 {dimension_numbers = #tpu.dot_dimension_numbers<[1], [0], [0], [1], [0, 0, 1, 1], [], []>} : vector<32x8xf32>, vector<8x128xf32>, vector<32x128xf32> -> vector<32x128xf32>
    %c0_12 = arith.constant 0 : index
    %c0_13 = arith.constant 0 : index
    %c0_14 = arith.constant 0 : index
    %14 = vector.load %arg10[%c0_12, %c0_13, %c0_14] : memref<1x1x128xf32, #tpu.memory_space<vmem>>, vector<1x1x128xf32>
    %15 = vector.shape_cast %14 : vector<1x1x128xf32> to vector<1x128xf32>
    %16 = vector.broadcast %15 : vector<1x128xf32> to vector<32x128xf32>
    %17 = arith.addf %13, %16 : vector<32x128xf32>
    %c0_15 = arith.constant 0 : index
    %c0_16 = arith.constant 0 : index
    %18 = vector.load %arg24[%c0_15, %c0_16] : memref<32x16xbf16, #tpu.memory_space<vmem>>, vector<32x16xbf16>
    %cst_17 = arith.constant dense<0.000000e+00> : vector<32x128xf32>
    %19 = tpu.matmul %18, %9, %cst_17 {dimension_numbers = #tpu.dot_dimension_numbers<[1], [0], [0], [1], [0, 0, 1, 1], [], []>} : vector<32x16xbf16>, vector<16x128xbf16>, vector<32x128xf32> -> vector<32x128xf32>
    %20 = arith.addf %19, %17 : vector<32x128xf32>
    %cst_18 = arith.constant 0.000000e+00 : f32
    %21 = vector.broadcast %cst_18 : f32 to vector<32x128xf32>
    %22 = arith.maximumf %20, %21 : vector<32x128xf32>
    %c0_19 = arith.constant 0 : index
    %c0_20 = arith.constant 0 : index
    %23 = vector.load %arg25[%c0_19, %c0_20] : memref<16x32xbf16, #tpu.memory_space<vmem>>, vector<16x32xbf16>
    %24 = arith.truncf %22 : vector<32x128xf32> to vector<32x128xbf16>
    %cst_21 = arith.constant dense<0.000000e+00> : vector<16x128xf32>
    %25 = tpu.matmul %23, %24, %cst_21 {dimension_numbers = #tpu.dot_dimension_numbers<[1], [0], [0], [1], [0, 0, 1, 1], [], []>} : vector<16x32xbf16>, vector<32x128xbf16>, vector<16x128xf32> -> vector<16x128xf32>
    %c0_22 = arith.constant 0 : index
    %c0_23 = arith.constant 0 : index
    %c0_24 = arith.constant 0 : index
    %26 = vector.load %arg8[%c0_22, %c0_23, %c0_24] : memref<1x1x128xf32, #tpu.memory_space<vmem>>, vector<1x1x128xf32>
    %27 = vector.shape_cast %26 : vector<1x1x128xf32> to vector<1x128xf32>
    %28 = vector.broadcast %27 : vector<1x128xf32> to vector<16x128xf32>
    %29 = arith.mulf %28, %8 : vector<16x128xf32>
    %30 = arith.addf %29, %25 : vector<16x128xf32>
    %31 = arith.truncf %30 : vector<16x128xf32> to vector<16x128xbf16>
    %c0_25 = arith.constant 0 : index
    %c0_26 = arith.constant 0 : index
    %c0_27 = arith.constant 0 : index
    %32 = vector.load %arg11[%c0_25, %c0_26, %c0_27] : memref<1x128x128xbf16, #tpu.memory_space<vmem>>, vector<1x128x128xbf16>
    %33 = vector.shape_cast %32 : vector<1x128x128xbf16> to vector<128x128xbf16>
    %cst_28 = arith.constant dense<0.000000e+00> : vector<16x128xf32>
    %34 = tpu.matmul %31, %33, %cst_28 {dimension_numbers = #tpu.dot_dimension_numbers<[1], [0], [0], [1], [0, 0, 1, 1], [], []>} : vector<16x128xbf16>, vector<128x128xbf16>, vector<16x128xf32> -> vector<16x128xf32>
    %c0_29 = arith.constant 0 : index
    %c0_30 = arith.constant 0 : index
    %c0_31 = arith.constant 0 : index
    %35 = vector.load %arg12[%c0_29, %c0_30, %c0_31] : memref<1x1x128xf32, #tpu.memory_space<vmem>>, vector<1x1x128xf32>
    %36 = vector.shape_cast %35 : vector<1x1x128xf32> to vector<1x128xf32>
    %37 = vector.broadcast %36 : vector<1x128xf32> to vector<16x128xf32>
    %38 = arith.addf %34, %37 : vector<16x128xf32>
    %cst_32 = arith.constant 0.000000e+00 : f32
    %39 = vector.broadcast %cst_32 : f32 to vector<16x128xf32>
    %40 = arith.maximumf %38, %39 : vector<16x128xf32>
    %41 = arith.truncf %40 : vector<16x128xf32> to vector<16x128xbf16>
    %c0_33 = arith.constant 0 : index
    %c0_34 = arith.constant 0 : index
    %c0_35 = arith.constant 0 : index
    %42 = vector.load %arg13[%c0_33, %c0_34, %c0_35] : memref<1x128x128xbf16, #tpu.memory_space<vmem>>, vector<1x128x128xbf16>
    %43 = vector.shape_cast %42 : vector<1x128x128xbf16> to vector<128x128xbf16>
    %cst_36 = arith.constant dense<0.000000e+00> : vector<16x128xf32>
    %44 = tpu.matmul %41, %43, %cst_36 {dimension_numbers = #tpu.dot_dimension_numbers<[1], [0], [0], [1], [0, 0, 1, 1], [], []>} : vector<16x128xbf16>, vector<128x128xbf16>, vector<16x128xf32> -> vector<16x128xf32>
    %c0_37 = arith.constant 0 : index
    %c0_38 = arith.constant 0 : index
    %c0_39 = arith.constant 0 : index
    %45 = vector.load %arg14[%c0_37, %c0_38, %c0_39] : memref<1x1x128xf32, #tpu.memory_space<vmem>>, vector<1x1x128xf32>
    %46 = vector.shape_cast %45 : vector<1x1x128xf32> to vector<1x128xf32>
    %47 = vector.broadcast %46 : vector<1x128xf32> to vector<16x128xf32>
    %48 = arith.addf %44, %47 : vector<16x128xf32>
    %cst_40 = arith.constant 0.000000e+00 : f32
    %49 = vector.broadcast %cst_40 : f32 to vector<16x128xf32>
    %50 = arith.maximumf %48, %49 : vector<16x128xf32>
    %true = arith.constant true
    %51 = arith.xori %0, %true : i1
    %52 = arith.extui %51 : i1 to i32
    %c0_i32_41 = arith.constant 0 : i32
    %53 = arith.cmpi ne, %52, %c0_i32_41 : i32
    scf.if %53 {
      %c0_43 = arith.constant 0 : index
      %c0_44 = arith.constant 0 : index
      %56 = vector.load %arg20[%c0_43, %c0_44] : memref<16x128xf32, #tpu.memory_space<vmem>>, vector<16x128xf32>
      tpu.vector_store %arg20[%c0_43, %c0_44], %50 {strides = array<i32>} : memref<16x128xf32, #tpu.memory_space<vmem>>, vector<16x128xf32>,
      %c0_45 = arith.constant 0 : index
      %c0_46 = arith.constant 0 : index
      %57 = vector.load %arg23[%c0_45, %c0_46] : memref<8x16xf32, #tpu.memory_space<vmem>>, vector<8x16xf32>
      %cst_47 = arith.constant dense<0.000000e+00> : vector<8x128xf32>
      %58 = tpu.matmul %57, %8, %cst_47 {dimension_numbers = #tpu.dot_dimension_numbers<[1], [0], [0], [1], [0, 0, 1, 1], [], []>} : vector<8x16xf32>, vector<16x128xf32>, vector<8x128xf32> -> vector<8x128xf32>
      %59 = arith.addf %58, %5 : vector<8x128xf32>
      %60 = arith.truncf %59 : vector<8x128xf32> to vector<8x128xbf16>
      %c0_48 = arith.constant 0 : index
      %c0_49 = arith.constant 0 : index
      %c0_50 = arith.constant 0 : index
      %61 = vector.load %arg15[%c0_48, %c0_49, %c0_50] : memref<1x128x128xbf16, #tpu.memory_space<vmem>>, vector<1x128x128xbf16>
      %62 = vector.shape_cast %61 : vector<1x128x128xbf16> to vector<128x128xbf16>
      %cst_51 = arith.constant dense<0.000000e+00> : vector<8x128xf32>
      %63 = tpu.matmul %60, %62, %cst_51 {dimension_numbers = #tpu.dot_dimension_numbers<[1], [0], [0], [1], [0, 0, 1, 1], [], []>} : vector<8x128xbf16>, vector<128x128xbf16>, vector<8x128xf32> -> vector<8x128xf32>
      %c0_52 = arith.constant 0 : index
      %c0_53 = arith.constant 0 : index
      %c0_54 = arith.constant 0 : index
      %64 = vector.load %arg16[%c0_52, %c0_53, %c0_54] : memref<1x1x128xf32, #tpu.memory_space<vmem>>, vector<1x1x128xf32>
      %65 = vector.shape_cast %64 : vector<1x1x128xf32> to vector<1x128xf32>
      %66 = vector.broadcast %65 : vector<1x128xf32> to vector<8x128xf32>
      %67 = arith.addf %63, %66 : vector<8x128xf32>
      %cst_55 = arith.constant 0.000000e+00 : f32
      %68 = vector.broadcast %cst_55 : f32 to vector<8x128xf32>
      %69 = arith.maximumf %67, %68 : vector<8x128xf32>
      %70 = arith.truncf %69 : vector<8x128xf32> to vector<8x128xbf16>
      %c0_56 = arith.constant 0 : index
      %c0_57 = arith.constant 0 : index
      %c0_58 = arith.constant 0 : index
      %71 = vector.load %arg17[%c0_56, %c0_57, %c0_58] : memref<1x128x128xbf16, #tpu.memory_space<vmem>>, vector<1x128x128xbf16>
      %72 = vector.shape_cast %71 : vector<1x128x128xbf16> to vector<128x128xbf16>
      %cst_59 = arith.constant dense<0.000000e+00> : vector<8x128xf32>
      %73 = tpu.matmul %70, %72, %cst_59 {dimension_numbers = #tpu.dot_dimension_numbers<[1], [0], [0], [1], [0, 0, 1, 1], [], []>} : vector<8x128xbf16>, vector<128x128xbf16>, vector<8x128xf32> -> vector<8x128xf32>
      %c0_60 = arith.constant 0 : index
      %c0_61 = arith.constant 0 : index
      %c0_62 = arith.constant 0 : index
      %74 = vector.load %arg18[%c0_60, %c0_61, %c0_62] : memref<1x1x128xf32, #tpu.memory_space<vmem>>, vector<1x1x128xf32>
      %75 = vector.shape_cast %74 : vector<1x1x128xf32> to vector<1x128xf32>
      %76 = vector.broadcast %75 : vector<1x128xf32> to vector<8x128xf32>
      %77 = arith.addf %73, %76 : vector<8x128xf32>
      %cst_63 = arith.constant 0.000000e+00 : f32
      %78 = vector.broadcast %cst_63 : f32 to vector<8x128xf32>
      %79 = arith.maximumf %77, %78 : vector<8x128xf32>
      %c0_64 = arith.constant 0 : index
      %c0_65 = arith.constant 0 : index
      %80 = vector.load %arg21[%c0_64, %c0_65] : memref<8x128xf32, #tpu.memory_space<vmem>>, vector<8x128xf32>
      tpu.vector_store %arg21[%c0_64, %c0_65], %79 {strides = array<i32>} : memref<8x128xf32, #tpu.memory_space<vmem>>, vector<8x128xf32>,
    } else {
    }
    %54 = arith.extui %0 : i1 to i32
    %c0_i32_42 = arith.constant 0 : i32
    %55 = arith.cmpi ne, %54, %c0_i32_42 : i32
    scf.if %55 {
      %c0_43 = arith.constant 0 : index
      %c0_44 = arith.constant 0 : index
      %56 = vector.load %arg19[%c0_43, %c0_44] : memref<16x128xf32, #tpu.memory_space<vmem>>, vector<16x128xf32>
      tpu.vector_store %arg19[%c0_43, %c0_44], %48 {strides = array<i32>} : memref<16x128xf32, #tpu.memory_space<vmem>>, vector<16x128xf32>,
    } else {
    }
    return
  }
  func.func @transform_0(%arg0: i32) -> (i32, i32) {
    %c0_i32 = arith.constant 0 : i32
    %c0_i32_0 = arith.constant 0 : i32
    %c0_i32_1 = arith.constant 0 : i32
    return %c0_i32, %c0_i32_0 : i32, i32
  }
  func.func @transform_1(%arg0: i32) -> (i32, i32) {
    %c0_i32 = arith.constant 0 : i32
    %c0_i32_0 = arith.constant 0 : i32
    %c0_i32_1 = arith.constant 0 : i32
    return %c0_i32, %c0_i32_0 : i32, i32
  }
  func.func @transform_2(%arg0: i32) -> (i32, i32) {
    %c0_i32 = arith.constant 0 : i32
    %c0_i32_0 = arith.constant 0 : i32
    %c0_i32_1 = arith.constant 0 : i32
    return %c0_i32, %c0_i32_0 : i32, i32
  }
  func.func @transform_3(%arg0: i32) -> (i32, i32) {
    %c0_i32 = arith.constant 0 : i32
    %c0_i32_0 = arith.constant 0 : i32
    %c0_i32_1 = arith.constant 0 : i32
    return %c0_i32, %c0_i32_0 : i32, i32
  }
  func.func @transform_4(%arg0: i32) -> (i32, i32) {
    %c0_i32 = arith.constant 0 : i32
    %c0_i32_0 = arith.constant 0 : i32
    %c0_i32_1 = arith.constant 0 : i32
    return %c0_i32, %c0_i32_0 : i32, i32
  }
  func.func @transform_5(%arg0: i32) -> (i32, i32) {
    %c0_i32 = arith.constant 0 : i32
    %c0_i32_0 = arith.constant 0 : i32
    %c0_i32_1 = arith.constant 0 : i32
    return %c0_i32, %c0_i32_0 : i32, i32
  }
  func.func @transform_6(%arg0: i32) -> (i32, i32) {
    %c0_i32 = arith.constant 0 : i32
    %c0_i32_0 = arith.constant 0 : i32
    %c0_i32_1 = arith.constant 0 : i32
    return %c0_i32, %c0_i32_0 : i32, i32
  }
  func.func @transform_7(%arg0: i32) -> (i32, i32, i32) {
    %c0_i32 = arith.constant 0 : i32
    %c0_i32_0 = arith.constant 0 : i32
    %c0_i32_1 = arith.constant 0 : i32
    return %arg0, %c0_i32, %c0_i32_0 : i32, i32, i32
  }
  func.func @transform_8(%arg0: i32) -> (i32, i32, i32) {
    %c0_i32 = arith.constant 0 : i32
    %c0_i32_0 = arith.constant 0 : i32
    %c0_i32_1 = arith.constant 0 : i32
    return %arg0, %c0_i32, %c0_i32_0 : i32, i32, i32
  }
  func.func @transform_9(%arg0: i32) -> (i32, i32, i32) {
    %c0_i32 = arith.constant 0 : i32
    %c0_i32_0 = arith.constant 0 : i32
    %c0_i32_1 = arith.constant 0 : i32
    return %arg0, %c0_i32, %c0_i32_0 : i32, i32, i32
  }
  func.func @transform_10(%arg0: i32) -> (i32, i32, i32) {
    %c0_i32 = arith.constant 0 : i32
    %c0_i32_0 = arith.constant 0 : i32
    %c0_i32_1 = arith.constant 0 : i32
    return %arg0, %c0_i32, %c0_i32_0 : i32, i32, i32
  }
  func.func @transform_11(%arg0: i32) -> (i32, i32, i32) {
    %c0_i32 = arith.constant 0 : i32
    %c0_i32_0 = arith.constant 0 : i32
    %c0_i32_1 = arith.constant 0 : i32
    return %arg0, %c0_i32, %c0_i32_0 : i32, i32, i32
  }
  func.func @transform_12(%arg0: i32) -> (i32, i32, i32) {
    %c0_i32 = arith.constant 0 : i32
    %c0_i32_0 = arith.constant 0 : i32
    %c0_i32_1 = arith.constant 0 : i32
    return %arg0, %c0_i32, %c0_i32_0 : i32, i32, i32
  }
  func.func @transform_13(%arg0: i32) -> (i32, i32, i32) {
    %c0_i32 = arith.constant 0 : i32
    %c0_i32_0 = arith.constant 0 : i32
    %c0_i32_1 = arith.constant 0 : i32
    return %arg0, %c0_i32, %c0_i32_0 : i32, i32, i32
  }
  func.func @transform_14(%arg0: i32) -> (i32, i32, i32) {
    %c0_i32 = arith.constant 0 : i32
    %c0_i32_0 = arith.constant 0 : i32
    %c0_i32_1 = arith.constant 0 : i32
    return %arg0, %c0_i32, %c0_i32_0 : i32, i32, i32
  }
  func.func @transform_15(%arg0: i32) -> (i32, i32, i32) {
    %c0_i32 = arith.constant 0 : i32
    %c0_i32_0 = arith.constant 0 : i32
    %c0_i32_1 = arith.constant 0 : i32
    return %arg0, %c0_i32, %c0_i32_0 : i32, i32, i32
  }
  func.func @transform_16(%arg0: i32) -> (i32, i32, i32) {
    %c0_i32 = arith.constant 0 : i32
    %c0_i32_0 = arith.constant 0 : i32
    %c0_i32_1 = arith.constant 0 : i32
    return %arg0, %c0_i32, %c0_i32_0 : i32, i32, i32
  }
  func.func @transform_17(%arg0: i32) -> (i32, i32, i32) {
    %c0_i32 = arith.constant 0 : i32
    %c0_i32_0 = arith.constant 0 : i32
    %c0_i32_1 = arith.constant 0 : i32
    return %arg0, %c0_i32, %c0_i32_0 : i32, i32, i32
  }
  func.func @transform_18(%arg0: i32) -> (i32, i32) {
    %c0_i32 = arith.constant 0 : i32
    %c0_i32_0 = arith.constant 0 : i32
    %c0_i32_1 = arith.constant 0 : i32
    return %c0_i32, %c0_i32_0 : i32, i32
  }
}

</mosaic_0001>

<llo_original>
// kernel: gnn_node_virtualnode_forward.1
$region0: #{gnn_node_virtualnode_forward.1}
  #allocation0 [shape = 'u32[]', space=smem, size = 0x4, offset = 0x4, fixed_abs, tag = 'smem constant byte address 0x4 - core index']
  #allocation1 [shape = 'u32[144,128]{1,0:T(1,128)}', space=vmem, size = 0x12000, scoped, tag = 'internal scratch']
  #allocation2 [shape = 'f32[16,128]{1,0:T(8,128)}', space=vmem, size = 0x2000, scoped, tag = 'scratch operand']
  #allocation3 [shape = 'f32[8,128]{1,0:T(8,128)}', space=vmem, size = 0x1000, scoped, tag = 'scratch operand']
  #allocation4 [shape = 'f32[16,8]{1,0:T(8,128)}', space=vmem, size = 0x2000, scoped, tag = 'scratch operand']
  #allocation5 [shape = 'f32[8,16]{1,0:T(8,128)}', space=vmem, size = 0x1000, scoped, tag = 'scratch operand']
  #allocation6 [shape = 'bf16[32,16]{1,0:T(8,128)(2,1)}', space=vmem, size = 0x2000, scoped, tag = 'scratch operand']
  #allocation7 [shape = 'bf16[16,32]{1,0:T(8,128)(2,1)}', space=vmem, size = 0x1000, scoped, tag = 'scratch operand']
  %s0 = inlined_call_operand.vmem [shape: f32[16,128], index: 0, kind: input, shape index: {}]
  %s1 = inlined_call_operand.vmem [shape: f32[8,128], index: 1, kind: input, shape index: {}]
  %s2 = inlined_call_operand.vmem [shape: s32[16,1], index: 2, kind: input, shape index: {}]
  %s3 = inlined_call_operand.vmem [shape: s32[1,16], index: 3, kind: input, shape index: {}]
  %s4 = inlined_call_operand.vmem [shape: s32[32,1], index: 4, kind: input, shape index: {}]
  %s5 = inlined_call_operand.vmem [shape: s32[1,32], index: 5, kind: input, shape index: {}]
  %s6 = inlined_call_operand.vmem [shape: f32[32,8], index: 6, kind: input, shape index: {}]
  %s7 = inlined_call_operand.vmem [shape: f32[2,1,128], index: 7, kind: input, shape index: {}]
  %s8 = inlined_call_operand.vmem [shape: f32[2,8,128], index: 8, kind: input, shape index: {}]
  %s9 = inlined_call_operand.vmem [shape: f32[2,1,128], index: 9, kind: input, shape index: {}]
  %s10 = inlined_call_operand.vmem [shape: bf16[2,128,128], index: 10, kind: input, shape index: {}]
  %s11 = inlined_call_operand.vmem [shape: f32[2,1,128], index: 11, kind: input, shape index: {}]
  %s12 = inlined_call_operand.hbm [shape: bf16[2,128,128], index: 12, kind: input, shape index: {}]
  %s13 = inlined_call_operand.vmem [shape: f32[2,1,128], index: 13, kind: input, shape index: {}]
  %s14 = inlined_call_operand.hbm [shape: bf16[2,128,128], index: 14, kind: input, shape index: {}]
  %s15 = inlined_call_operand.vmem [shape: f32[2,1,128], index: 15, kind: input, shape index: {}]
  %s16 = inlined_call_operand.hbm [shape: bf16[2,128,128], index: 16, kind: input, shape index: {}]
  %s17 = inlined_call_operand.vmem [shape: f32[2,1,128], index: 17, kind: input, shape index: {}]
  %s18 = inlined_call_operand.hbm [shape: f32[16,128], index: 18, kind: output, shape index: {}]
  %s19 = sld [smem:[#allocation0]]
  $region129: #{gnn_node_virtualnode_forward.1} parent=0
    _
  %s21 = ssub.s32 1, %s19
  %s22 = scalar_select 0, %s21, %s19
  $region1: #{gnn_node_virtualnode_forward.1} parent=0
    #allocation8 [shape = 'u8[65536]{0}', space=vmem, size = 0x10000, scoped, tag = 'input window, operand 12']
    #allocation9 [shape = 's32[2]{0}', space=sflag, size = 0x8, scoped, tag = 'scoped memory for gnn_node_virtualnode_forward.1']
    #allocation10 [shape = 's32[2]{0}', space=sflag, size = 0x8, scoped, tag = 'scoped memory for gnn_node_virtualnode_forward.1']
    #allocation11 [shape = 'u8[65536]{0}', space=vmem, size = 0x10000, scoped, tag = 'input window, operand 14']
    #allocation12 [shape = 's32[2]{0}', space=sflag, size = 0x8, scoped, tag = 'scoped memory for gnn_node_virtualnode_forward.1']
    #allocation13 [shape = 'u8[65536]{0}', space=vmem, size = 0x10000, scoped, tag = 'input window, operand 16']
    #allocation14 [shape = 'u8[8192]{0}', space=vmem, size = 0x2000, scoped, tag = 'output window, operand 0, single buffered']
    %23 = vsyncpa [#allocation9], 0
    %s24 = scalar_lea.sflag [#allocation9], 1
    %25 = vsyncpa %s24, 0
    %26 = vsyncpa [#allocation12], 0
    %s27 = scalar_lea.sflag [#allocation12], 1
    %28 = vsyncpa %s27, 0
    %29 = vsyncpa [#allocation10], 0
    loop: start=0, step=1, limit=4
    $region2: #{gnn_node_virtualnode_forward.1} parent=1 // loop_pre_header
      _
    $region3: #{gnn_node_virtualnode_forward.1} parent=1 // loop_header
      %s31 = sphi 0, %s35
      %p32 = scmp.ge.s32.totalorder %s31, 4
      %s39 = sphi 0, %s39
      %s41 = sphi 0, %s39
      %s42 = sphi 0, %s41
      %s56 = sphi 0, %s42
      %s60 = sphi 0, %s60
      %s62 = sphi 0, %s60
      %s63 = sphi 0, %s62
      %s77 = sphi 0, %s63
      %s81 = sphi 0, %s81
      %s83 = sphi 0, %s81
      %s84 = sphi 0, %s83
      %s98 = sphi 0, %s84
      %s102 = sphi 0, %s102
      %s104 = sphi 0, %s102
      %s105 = sphi 0, %s104
      %s119 = sphi 0, %s105
      %s123 = sphi 0, %s123
      %s125 = sphi 0, %s123
      %s126 = sphi 0, %s125
      %s140 = sphi 0, %s126
      %s144 = sphi 0, %s144
      %s146 = sphi 0, %s144
      %s147 = sphi 0, %s146
      %s161 = sphi 0, %s147
      %s165 = sphi 0, %s165
      %s167 = sphi 0, %s165
      %s168 = sphi 0, %s167
      %s182 = sphi 0, %s168
      %s188 = sphi 0, %s190
      %s191 = sphi 0, %s188
      %s192 = sphi 0, %s191
      %s208 = sphi 0, %s192
      %s214 = sphi 0, %s216
      %s217 = sphi 0, %s214
      %s218 = sphi 0, %s217
      %s234 = sphi 0, %s218
      %s240 = sphi 0, %s242
      %s243 = sphi 0, %s240
      %s244 = sphi 0, %s243
      %s260 = sphi 0, %s244
      %s266 = sphi 0, %s268
      %s269 = sphi 0, %s266
      %s270 = sphi 0, %s269
      %s286 = sphi 0, %s270
      %s292 = sphi 0, %s294
      %s295 = sphi 0, %s292
      %s296 = sphi 0, %s295
      %s312 = sphi 0, %s296
      %s318 = sphi 0, %s320
      %s321 = sphi 0, %s318
      %s322 = sphi 0, %s321
      %s338 = sphi 0, %s322
      %s344 = sphi 0, %s346
      %s347 = sphi 0, %s344
      %s348 = sphi 0, %s347
      %s364 = sphi 0, %s348
      %s370 = sphi 0, %s372
      %s373 = sphi 0, %s370
      %s374 = sphi 0, %s373
      %s390 = sphi 0, %s374
      %s396 = sphi 0, %s398
      %s399 = sphi 0, %s396
      %s400 = sphi 0, %s399
      %s416 = sphi 0, %s400
      %s422 = sphi 0, %s424
      %s425 = sphi 0, %s422
      %s426 = sphi 0, %s425
      %s442 = sphi 0, %s426
      %s448 = sphi 0, %s450
      %s451 = sphi 0, %s448
      %s452 = sphi 0, %s451
      %s468 = sphi 0, %s452
      %s472 = sphi 0, %s472
      %s474 = sphi 0, %s472
      %s475 = sphi 0, %s474
      %s489 = sphi 0, %s475
    $region4: #{gnn_node_virtualnode_forward.1} parent=1 // loop_header_branch
      %34 = sbr.rel (%p32) target = $region8
    $region5: #{gnn_node_virtualnode_forward.1} parent=1 // loop_body
      %s36 = ssub.s32 %s31, 1
      %s37 = ssub.s32 %s31, 2
      %s38 = sadd.s32 %s31, 1
      %s40 = sadd.s32 %s39, 1
      %p43 = scmp.eq.s32.totalorder %s31, 1
      %p44 = scmp.ne.s32.totalorder %s39, %s41
      %p45 = scmp.eq.s32.totalorder %s31, 0
      %p46 = por %p44, %p45
      %p47 = scmp.ne.s32.totalorder %s39, %s41
      %p48 = scmp.eq.s32.totalorder %s36, 1
      %p49 = por %p47, %p48
      %p50 = scmp.ne.s32.totalorder %s41, %s42
      %p51 = scmp.eq.s32.totalorder %s36, 0
      %p52 = por %p50, %p51
      %p53 = scmp.ne.s32.totalorder %s41, %s42
      %p54 = scmp.eq.s32.totalorder %s37, 1
      %p55 = por %p53, %p54
      %p57 = scmp.ne.s32.totalorder %s42, %s56
      %p58 = scmp.eq.s32.totalorder %s37, 0
      %p59 = por %p57, %p58
      %s61 = sadd.s32 %s60, 1
      %p64 = scmp.eq.s32.totalorder %s31, 1
      %p65 = scmp.ne.s32.totalorder %s60, %s62
      %p66 = scmp.eq.s32.totalorder %s31, 0
      %p67 = por %p65, %p66
      %p68 = scmp.ne.s32.totalorder %s60, %s62
      %p69 = scmp.eq.s32.totalorder %s36, 1
      %p70 = por %p68, %p69
      %p71 = scmp.ne.s32.totalorder %s62, %s63
      %p72 = scmp.eq.s32.totalorder %s36, 0
      %p73 = por %p71, %p72
      %p74 = scmp.ne.s32.totalorder %s62, %s63
      %p75 = scmp.eq.s32.totalorder %s37, 1
      %p76 = por %p74, %p75
      %p78 = scmp.ne.s32.totalorder %s63, %s77
      %p79 = scmp.eq.s32.totalorder %s37, 0
      %p80 = por %p78, %p79
      %s82 = sadd.s32 %s81, 1
      %p85 = scmp.eq.s32.totalorder %s31, 1
      %p86 = scmp.ne.s32.totalorder %s81, %s83
      %p87 = scmp.eq.s32.totalorder %s31, 0
      %p88 = por %p86, %p87
      %p89 = scmp.ne.s32.totalorder %s81, %s83
      %p90 = scmp.eq.s32.totalorder %s36, 1
      %p91 = por %p89, %p90
      %p92 = scmp.ne.s32.totalorder %s83, %s84
      %p93 = scmp.eq.s32.totalorder %s36, 0
      %p94 = por %p92, %p93
      %p95 = scmp.ne.s32.totalorder %s83, %s84
      %p96 = scmp.eq.s32.totalorder %s37, 1
      %p97 = por %p95, %p96
      %p99 = scmp.ne.s32.totalorder %s84, %s98
      %p100 = scmp.eq.s32.totalorder %s37, 0
      %p101 = por %p99, %p100
      %s103 = sadd.s32 %s102, 1
      %p106 = scmp.eq.s32.totalorder %s31, 1
      %p107 = scmp.ne.s32.totalorder %s102, %s104
      %p108 = scmp.eq.s32.totalorder %s31, 0
      %p109 = por %p107, %p108
      %p110 = scmp.ne.s32.totalorder %s102, %s104
      %p111 = scmp.eq.s32.totalorder %s36, 1
      %p112 = por %p110, %p111
      %p113 = scmp.ne.s32.totalorder %s104, %s105
      %p114 = scmp.eq.s32.totalorder %s36, 0
      %p115 = por %p113, %p114
      %p116 = scmp.ne.s32.totalorder %s104, %s105
      %p117 = scmp.eq.s32.totalorder %s37, 1
      %p118 = por %p116, %p117
      %p120 = scmp.ne.s32.totalorder %s105, %s119
      %p121 = scmp.eq.s32.totalorder %s37, 0
      %p122 = por %p120, %p121
      %s124 = sadd.s32 %s123, 1
      %p127 = scmp.eq.s32.totalorder %s31, 1
      %p128 = scmp.ne.s32.totalorder %s123, %s125
      %p129 = scmp.eq.s32.totalorder %s31, 0
      %p130 = por %p128, %p129
      %p131 = scmp.ne.s32.totalorder %s123, %s125
      %p132 = scmp.eq.s32.totalorder %s36, 1
      %p133 = por %p131, %p132
      %p134 = scmp.ne.s32.totalorder %s125, %s126
      %p135 = scmp.eq.s32.totalorder %s36, 0
      %p136 = por %p134, %p135
      %p137 = scmp.ne.s32.totalorder %s125, %s126
      %p138 = scmp.eq.s32.totalorder %s37, 1
      %p139 = por %p137, %p138
      %p141 = scmp.ne.s32.totalorder %s126, %s140
      %p142 = scmp.eq.s32.totalorder %s37, 0
      %p143 = por %p141, %p142
      %s145 = sadd.s32 %s144, 1
      %p148 = scmp.eq.s32.totalorder %s31, 1
      %p149 = scmp.ne.s32.totalorder %s144, %s146
      %p150 = scmp.eq.s32.totalorder %s31, 0
      %p151 = por %p149, %p150
      %p152 = scmp.ne.s32.totalorder %s144, %s146
      %p153 = scmp.eq.s32.totalorder %s36, 1
      %p154 = por %p152, %p153
      %p155 = scmp.ne.s32.totalorder %s146, %s147
      %p156 = scmp.eq.s32.totalorder %s36, 0
      %p157 = por %p155, %p156
      %p158 = scmp.ne.s32.totalorder %s146, %s147
      %p159 = scmp.eq.s32.totalorder %s37, 1
      %p160 = por %p158, %p159
      %p162 = scmp.ne.s32.totalorder %s147, %s161
      %p163 = scmp.eq.s32.totalorder %s37, 0
      %p164 = por %p162, %p163
      %s166 = sadd.s32 %s165, 1
      %p169 = scmp.eq.s32.totalorder %s31, 1
      %p170 = scmp.ne.s32.totalorder %s165, %s167
      %p171 = scmp.eq.s32.totalorder %s31, 0
      %p172 = por %p170, %p171
      %p173 = scmp.ne.s32.totalorder %s165, %s167
      %p174 = scmp.eq.s32.totalorder %s36, 1
      %p175 = por %p173, %p174
      %p176 = scmp.ne.s32.totalorder %s167, %s168
      %p177 = scmp.eq.s32.totalorder %s36, 0
      %p178 = por %p176, %p177
      %p179 = scmp.ne.s32.totalorder %s167, %s168
      %p180 = scmp.eq.s32.totalorder %s37, 1
      %p181 = por %p179, %p180
      %p183 = scmp.ne.s32.totalorder %s168, %s182
      %p184 = scmp.eq.s32.totalorder %s37, 0
      %p185 = por %p183, %p184
      %s186 = ssub.s32 %s31, %s38
      %p187 = scmp.eq.s32.totalorder %s186, 0
      %s189 = sadd.s32 %s188, 1
      %s190 = scalar_select %p187, %s188, %s189
      %p193 = pneg %p187
      %p194 = scmp.eq.s32.totalorder %s31, 1
      %p195 = por %p193, %p194
      %p196 = scmp.ne.s32.totalorder %s188, %s191
      %p197 = scmp.eq.s32.totalorder %s31, 0
      %p198 = por %p196, %p197
      %p199 = scmp.ne.s32.totalorder %s188, %s191
      %p200 = scmp.eq.s32.totalorder %s36, 1
      %p201 = por %p199, %p200
      %p202 = scmp.ne.s32.totalorder %s191, %s192
      %p203 = scmp.eq.s32.totalorder %s36, 0
      %p204 = por %p202, %p203
      %p205 = scmp.ne.s32.totalorder %s191, %s192
      %p206 = scmp.eq.s32.totalorder %s37, 1
      %p207 = por %p205, %p206
      %p209 = scmp.ne.s32.totalorder %s192, %s208
      %p210 = scmp.eq.s32.totalorder %s37, 0
      %p211 = por %p209, %p210
      %s212 = ssub.s32 %s31, %s38
      %p213 = scmp.eq.s32.totalorder %s212, 0
      %s215 = sadd.s32 %s214, 1
      %s216 = scalar_select %p213, %s214, %s215
      %p219 = pneg %p213
      %p220 = scmp.eq.s32.totalorder %s31, 1
      %p221 = por %p219, %p220
      %p222 = scmp.ne.s32.totalorder %s214, %s217
      %p223 = scmp.eq.s32.totalorder %s31, 0
      %p224 = por %p222, %p223
      %p225 = scmp.ne.s32.totalorder %s214, %s217
      %p226 = scmp.eq.s32.totalorder %s36, 1
      %p227 = por %p225, %p226
      %p228 = scmp.ne.s32.totalorder %s217, %s218
      %p229 = scmp.eq.s32.totalorder %s36, 0
      %p230 = por %p228, %p229
      %p231 = scmp.ne.s32.totalorder %s217, %s218
      %p232 = scmp.eq.s32.totalorder %s37, 1
      %p233 = por %p231, %p232
      %p235 = scmp.ne.s32.totalorder %s218, %s234
      %p236 = scmp.eq.s32.totalorder %s37, 0
      %p237 = por %p235, %p236
      %s238 = ssub.s32 %s31, %s38
      %p239 = scmp.eq.s32.totalorder %s238, 0
      %s241 = sadd.s32 %s240, 1
      %s242 = scalar_select %p239, %s240, %s241
      %p245 = pneg %p239
      %p246 = scmp.eq.s32.totalorder %s31, 1
      %p247 = por %p245, %p246
      %p248 = scmp.ne.s32.totalorder %s240, %s243
      %p249 = scmp.eq.s32.totalorder %s31, 0
      %p250 = por %p248, %p249
      %p251 = scmp.ne.s32.totalorder %s240, %s243
      %p252 = scmp.eq.s32.totalorder %s36, 1
      %p253 = por %p251, %p252
      %p254 = scmp.ne.s32.totalorder %s243, %s244
      %p255 = scmp.eq.s32.totalorder %s36, 0
      %p256 = por %p254, %p255
      %p257 = scmp.ne.s32.totalorder %s243, %s244
      %p258 = scmp.eq.s32.totalorder %s37, 1
      %p259 = por %p257, %p258
      %p261 = scmp.ne.s32.totalorder %s244, %s260
      %p262 = scmp.eq.s32.totalorder %s37, 0
      %p263 = por %p261, %p262
      %s264 = ssub.s32 %s31, %s38
      %p265 = scmp.eq.s32.totalorder %s264, 0
      %s267 = sadd.s32 %s266, 1
      %s268 = scalar_select %p265, %s266, %s267
      %p271 = pneg %p265
      %p272 = scmp.eq.s32.totalorder %s31, 1
      %p273 = por %p271, %p272
      %p274 = scmp.ne.s32.totalorder %s266, %s269
      %p275 = scmp.eq.s32.totalorder %s31, 0
      %p276 = por %p274, %p275
      %p277 = scmp.ne.s32.totalorder %s266, %s269
      %p278 = scmp.eq.s32.totalorder %s36, 1
      %p279 = por %p277, %p278
      %p280 = scmp.ne.s32.totalorder %s269, %s270
      %p281 = scmp.eq.s32.totalorder %s36, 0
      %p282 = por %p280, %p281
      %p283 = scmp.ne.s32.totalorder %s269, %s270
      %p284 = scmp.eq.s32.totalorder %s37, 1
      %p285 = por %p283, %p284
      %p287 = scmp.ne.s32.totalorder %s270, %s286
      %p288 = scmp.eq.s32.totalorder %s37, 0
      %p289 = por %p287, %p288
      %s290 = ssub.s32 %s31, %s38
      %p291 = scmp.eq.s32.totalorder %s290, 0
      %s293 = sadd.s32 %s292, 1
      %s294 = scalar_select %p291, %s292, %s293
      %p297 = pneg %p291
      %p298 = scmp.eq.s32.totalorder %s31, 1
      %p299 = por %p297, %p298
      %p300 = scmp.ne.s32.totalorder %s292, %s295
      %p301 = scmp.eq.s32.totalorder %s31, 0
      %p302 = por %p300, %p301
      %p303 = scmp.ne.s32.totalorder %s292, %s295
      %p304 = scmp.eq.s32.totalorder %s36, 1
      %p305 = por %p303, %p304
      %p306 = scmp.ne.s32.totalorder %s295, %s296
      %p307 = scmp.eq.s32.totalorder %s36, 0
      %p308 = por %p306, %p307
      %p309 = scmp.ne.s32.totalorder %s295, %s296
      %p310 = scmp.eq.s32.totalorder %s37, 1
      %p311 = por %p309, %p310
      %p313 = scmp.ne.s32.totalorder %s296, %s312
      %p314 = scmp.eq.s32.totalorder %s37, 0
      %p315 = por %p313, %p314
      %s316 = ssub.s32 %s31, %s38
      %p317 = scmp.eq.s32.totalorder %s316, 0
      %s319 = sadd.s32 %s318, 1
      %s320 = scalar_select %p317, %s318, %s319
      %p323 = pneg %p317
      %p324 = scmp.eq.s32.totalorder %s31, 1
      %p325 = por %p323, %p324
      %p326 = scmp.ne.s32.totalorder %s318, %s321
      %p327 = scmp.eq.s32.totalorder %s31, 0
      %p328 = por %p326, %p327
      %p329 = scmp.ne.s32.totalorder %s318, %s321
      %p330 = scmp.eq.s32.totalorder %s36, 1
      %p331 = por %p329, %p330
      %p332 = scmp.ne.s32.totalorder %s321, %s322
      %p333 = scmp.eq.s32.totalorder %s36, 0
      %p334 = por %p332, %p333
      %p335 = scmp.ne.s32.totalorder %s321, %s322
      %p336 = scmp.eq.s32.totalorder %s37, 1
      %p337 = por %p335, %p336
      %p339 = scmp.ne.s32.totalorder %s322, %s338
      %p340 = scmp.eq.s32.totalorder %s37, 0
      %p341 = por %p339, %p340
      %s342 = ssub.s32 %s31, %s38
      %p343 = scmp.eq.s32.totalorder %s342, 0
      %s345 = sadd.s32 %s344, 1
      %s346 = scalar_select %p343, %s344, %s345
      %p349 = pneg %p343
      %p350 = scmp.eq.s32.totalorder %s31, 1
      %p351 = por %p349, %p350
      %p352 = scmp.ne.s32.totalorder %s344, %s347
      %p353 = scmp.eq.s32.totalorder %s31, 0
      %p354 = por %p352, %p353
      %p355 = scmp.ne.s32.totalorder %s344, %s347
      %p356 = scmp.eq.s32.totalorder %s36, 1
      %p357 = por %p355, %p356
      %p358 = scmp.ne.s32.totalorder %s347, %s348
      %p359 = scmp.eq.s32.totalorder %s36, 0
      %p360 = por %p358, %p359
      %p361 = scmp.ne.s32.totalorder %s347, %s348
      %p362 = scmp.eq.s32.totalorder %s37, 1
      %p363 = por %p361, %p362
      %p365 = scmp.ne.s32.totalorder %s348, %s364
      %p366 = scmp.eq.s32.totalorder %s37, 0
      %p367 = por %p365, %p366
      %s368 = ssub.s32 %s31, %s38
      %p369 = scmp.eq.s32.totalorder %s368, 0
      %s371 = sadd.s32 %s370, 1
      %s372 = scalar_select %p369, %s370, %s371
      %p375 = pneg %p369
      %p376 = scmp.eq.s32.totalorder %s31, 1
      %p377 = por %p375, %p376
      %p378 = scmp.ne.s32.totalorder %s370, %s373
      %p379 = scmp.eq.s32.totalorder %s31, 0
      %p380 = por %p378, %p379
      %p381 = scmp.ne.s32.totalorder %s370, %s373
      %p382 = scmp.eq.s32.totalorder %s36, 1
      %p383 = por %p381, %p382
      %p384 = scmp.ne.s32.totalorder %s373, %s374
      %p385 = scmp.eq.s32.totalorder %s36, 0
      %p386 = por %p384, %p385
      %p387 = scmp.ne.s32.totalorder %s373, %s374
      %p388 = scmp.eq.s32.totalorder %s37, 1
      %p389 = por %p387, %p388
      %p391 = scmp.ne.s32.totalorder %s374, %s390
      %p392 = scmp.eq.s32.totalorder %s37, 0
      %p393 = por %p391, %p392
      %s394 = ssub.s32 %s31, %s38
      %p395 = scmp.eq.s32.totalorder %s394, 0
      %s397 = sadd.s32 %s396, 1
      %s398 = scalar_select %p395, %s396, %s397
      %p401 = pneg %p395
      %p402 = scmp.eq.s32.totalorder %s31, 1
      %p403 = por %p401, %p402
      %p404 = scmp.ne.s32.totalorder %s396, %s399
      %p405 = scmp.eq.s32.totalorder %s31, 0
      %p406 = por %p404, %p405
      %p407 = scmp.ne.s32.totalorder %s396, %s399
      %p408 = scmp.eq.s32.totalorder %s36, 1
      %p409 = por %p407, %p408
      %p410 = scmp.ne.s32.totalorder %s399, %s400
      %p411 = scmp.eq.s32.totalorder %s36, 0
      %p412 = por %p410, %p411
      %p413 = scmp.ne.s32.totalorder %s399, %s400
      %p414 = scmp.eq.s32.totalorder %s37, 1
      %p415 = por %p413, %p414
      %p417 = scmp.ne.s32.totalorder %s400, %s416
      %p418 = scmp.eq.s32.totalorder %s37, 0
      %p419 = por %p417, %p418
      %s420 = ssub.s32 %s31, %s38
      %p421 = scmp.eq.s32.totalorder %s420, 0
      %s423 = sadd.s32 %s422, 1
      %s424 = scalar_select %p421, %s422, %s423
      %p427 = pneg %p421
      %p428 = scmp.eq.s32.totalorder %s31, 1
      %p429 = por %p427, %p428
      %p430 = scmp.ne.s32.totalorder %s422, %s425
      %p431 = scmp.eq.s32.totalorder %s31, 0
      %p432 = por %p430, %p431
      %p433 = scmp.ne.s32.totalorder %s422, %s425
      %p434 = scmp.eq.s32.totalorder %s36, 1
      %p435 = por %p433, %p434
      %p436 = scmp.ne.s32.totalorder %s425, %s426
      %p437 = scmp.eq.s32.totalorder %s36, 0
      %p438 = por %p436, %p437
      %p439 = scmp.ne.s32.totalorder %s425, %s426
      %p440 = scmp.eq.s32.totalorder %s37, 1
      %p441 = por %p439, %p440
      %p443 = scmp.ne.s32.totalorder %s426, %s442
      %p444 = scmp.eq.s32.totalorder %s37, 0
      %p445 = por %p443, %p444
      %s446 = ssub.s32 %s31, %s38
      %p447 = scmp.eq.s32.totalorder %s446, 0
      %s449 = sadd.s32 %s448, 1
      %s450 = scalar_select %p447, %s448, %s449
      %p453 = pneg %p447
      %p454 = scmp.eq.s32.totalorder %s31, 1
      %p455 = por %p453, %p454
      %p456 = scmp.ne.s32.totalorder %s448, %s451
      %p457 = scmp.eq.s32.totalorder %s31, 0
      %p458 = por %p456, %p457
      %p459 = scmp.ne.s32.totalorder %s448, %s451
      %p460 = scmp.eq.s32.totalorder %s36, 1
      %p461 = por %p459, %p460
      %p462 = scmp.ne.s32.totalorder %s451, %s452
      %p463 = scmp.eq.s32.totalorder %s36, 0
      %p464 = por %p462, %p463
      %p465 = scmp.ne.s32.totalorder %s451, %s452
      %p466 = scmp.eq.s32.totalorder %s37, 1
      %p467 = por %p465, %p466
      %p469 = scmp.ne.s32.totalorder %s452, %s468
      %p470 = scmp.eq.s32.totalorder %s37, 0
      %p471 = por %p469, %p470
      %s473 = sadd.s32 %s472, 1
      %p476 = scmp.eq.s32.totalorder %s31, 1
      %p477 = scmp.ne.s32.totalorder %s472, %s474
      %p478 = scmp.eq.s32.totalorder %s31, 0
      %p479 = por %p477, %p478
      %p480 = scmp.ne.s32.totalorder %s472, %s474
      %p481 = scmp.eq.s32.totalorder %s36, 1
      %p482 = por %p480, %p481
      %p483 = scmp.ne.s32.totalorder %s474, %s475
      %p484 = scmp.eq.s32.totalorder %s36, 0
      %p485 = por %p483, %p484
      %p486 = scmp.ne.s32.totalorder %s474, %s475
      %p487 = scmp.eq.s32.totalorder %s37, 1
      %p488 = por %p486, %p487
      %p490 = scmp.ne.s32.totalorder %s475, %s489
      %p491 = scmp.eq.s32.totalorder %s37, 0
      %p492 = por %p490, %p491
      %p493 = scmp.le.s32.totalorder 1, %s31
      %p494 = scmp.lt.s32.totalorder %s31, 3
      %p495 = pnand %p493, %p494
      %p496 = pneg %p495
      // Predicated region
      $region9: #{gnn_node_virtualnode_forward.1} parent=5 // pred_check
        _
      $region10: #{gnn_node_virtualnode_forward.1} parent=5 // pred_check_branch
        %498 = sbr.rel (%p495) target = $region12
      $region11: #{gnn_node_virtualnode_forward.1} parent=5 // pred_region
        %s499 = ssub.s32 %s31, 1
        // Predicated region
        $region13: #{gnn_node_virtualnode_forward.1} parent=11 // pred_check
          %p500 = pneg %p52
        $region14: #{gnn_node_virtualnode_forward.1} parent=11 // pred_check_branch
          %502 = sbr.rel (%p500) target = $region16
        $region15: #{gnn_node_virtualnode_forward.1} parent=11 // pred_region
          _
        $region16: #{gnn_node_virtualnode_forward.1} parent=11 // pred_fallthru
          _
        // Predicated region
        $region17: #{gnn_node_virtualnode_forward.1} parent=11 // pred_check
          %p503 = pneg %p73
        $region18: #{gnn_node_virtualnode_forward.1} parent=11 // pred_check_branch
          %505 = sbr.rel (%p503) target = $region20
        $region19: #{gnn_node_virtualnode_forward.1} parent=11 // pred_region
          _
        $region20: #{gnn_node_virtualnode_forward.1} parent=11 // pred_fallthru
          _
        // Predicated region
        $region21: #{gnn_node_virtualnode_forward.1} parent=11 // pred_check
          %p506 = pneg %p94
        $region22: #{gnn_node_virtualnode_forward.1} parent=11 // pred_check_branch
          %508 = sbr.rel (%p506) target = $region24
        $region23: #{gnn_node_virtualnode_forward.1} parent=11 // pred_region
          _
        $region24: #{gnn_node_virtualnode_forward.1} parent=11 // pred_fallthru
          _
        // Predicated region
        $region25: #{gnn_node_virtualnode_forward.1} parent=11 // pred_check
          %p509 = pneg %p115
        $region26: #{gnn_node_virtualnode_forward.1} parent=11 // pred_check_branch
          %511 = sbr.rel (%p509) target = $region28
        $region27: #{gnn_node_virtualnode_forward.1} parent=11 // pred_region
          _
        $region28: #{gnn_node_virtualnode_forward.1} parent=11 // pred_fallthru
          _
        // Predicated region
        $region29: #{gnn_node_virtualnode_forward.1} parent=11 // pred_check
          %p512 = pneg %p136
        $region30: #{gnn_node_virtualnode_forward.1} parent=11 // pred_check_branch
          %514 = sbr.rel (%p512) target = $region32
        $region31: #{gnn_node_virtualnode_forward.1} parent=11 // pred_region
          _
        $region32: #{gnn_node_virtualnode_forward.1} parent=11 // pred_fallthru
          _
        // Predicated region
        $region33: #{gnn_node_virtualnode_forward.1} parent=11 // pred_check
          %p515 = pneg %p157
        $region34: #{gnn_node_virtualnode_forward.1} parent=11 // pred_check_branch
          %517 = sbr.rel (%p515) target = $region36
        $region35: #{gnn_node_virtualnode_forward.1} parent=11 // pred_region
          _
        $region36: #{gnn_node_virtualnode_forward.1} parent=11 // pred_fallthru
          _
        // Predicated region
        $region37: #{gnn_node_virtualnode_forward.1} parent=11 // pred_check
          %p518 = pneg %p178
        $region38: #{gnn_node_virtualnode_forward.1} parent=11 // pred_check_branch
          %520 = sbr.rel (%p518) target = $region40
        $region39: #{gnn_node_virtualnode_forward.1} parent=11 // pred_region
          _
        $region40: #{gnn_node_virtualnode_forward.1} parent=11 // pred_fallthru
          _
      $region12: #{gnn_node_virtualnode_forward.1} parent=5 // pred_fallthru
        _
      %p521 = scmp.lt.s32.totalorder %s31, 2
      // Predicated region
      $region41: #{gnn_node_virtualnode_forward.1} parent=5 // pred_check
        %p522 = pneg %p521
      $region42: #{gnn_node_virtualnode_forward.1} parent=5 // pred_check_branch
        %524 = sbr.rel (%p522) target = $region44
      $region43: #{gnn_node_virtualnode_forward.1} parent=5 // pred_region
        // Predicated region
        $region45: #{gnn_node_virtualnode_forward.1} parent=43 // pred_check
          %p525 = pneg %p198
        $region46: #{gnn_node_virtualnode_forward.1} parent=43 // pred_check_branch
          %527 = sbr.rel (%p525) target = $region48
        $region47: #{gnn_node_virtualnode_forward.1} parent=43 // pred_region
          %p528 = scmp.lt.s32.totalorder %s31, 1
          %s529 = scalar_select %p528, %s31, 1
          %s530 = scalar_lea.vmem %s7, %s529
        $region48: #{gnn_node_virtualnode_forward.1} parent=43 // pred_fallthru
          _
        // Predicated region
        $region49: #{gnn_node_virtualnode_forward.1} parent=43 // pred_check
          %p531 = pneg %p224
        $region50: #{gnn_node_virtualnode_forward.1} parent=43 // pred_check_branch
          %533 = sbr.rel (%p531) target = $region52
        $region51: #{gnn_node_virtualnode_forward.1} parent=43 // pred_region
          %p534 = scmp.lt.s32.totalorder %s31, 1
          %s535 = scalar_select %p534, %s31, 1
          %s536 = smul.addr %s535, 8
          %s537 = scalar_lea.vmem %s8, %s536
        $region52: #{gnn_node_virtualnode_forward.1} parent=43 // pred_fallthru
          _
        // Predicated region
        $region53: #{gnn_node_virtualnode_forward.1} parent=43 // pred_check
          %p538 = pneg %p250
        $region54: #{gnn_node_virtualnode_forward.1} parent=43 // pred_check_branch
          %540 = sbr.rel (%p538) target = $region56
        $region55: #{gnn_node_virtualnode_forward.1} parent=43 // pred_region
          %p541 = scmp.lt.s32.totalorder %s31, 1
          %s542 = scalar_select %p541, %s31, 1
          %s543 = scalar_lea.vmem %s9, %s542
        $region56: #{gnn_node_virtualnode_forward.1} parent=43 // pred_fallthru
          _
        // Predicated region
        $region57: #{gnn_node_virtualnode_forward.1} parent=43 // pred_check
          %p544 = pneg %p276
        $region58: #{gnn_node_virtualnode_forward.1} parent=43 // pred_check_branch
          %546 = sbr.rel (%p544) target = $region60
        $region59: #{gnn_node_virtualnode_forward.1} parent=43 // pred_region
          %p547 = scmp.lt.s32.totalorder %s31, 1
          %s548 = scalar_select %p547, %s31, 1
          %s549 = smul.addr %s548, 16
          %s550 = smul.addr %s549, 4
          %s551 = scalar_lea.vmem %s10, %s550
        $region60: #{gnn_node_virtualnode_forward.1} parent=43 // pred_fallthru
          _
        // Predicated region
        $region61: #{gnn_node_virtualnode_forward.1} parent=43 // pred_check
          %p552 = pneg %p302
        $region62: #{gnn_node_virtualnode_forward.1} parent=43 // pred_check_branch
          %554 = sbr.rel (%p552) target = $region64
        $region63: #{gnn_node_virtualnode_forward.1} parent=43 // pred_region
          %p555 = scmp.lt.s32.totalorder %s31, 1
          %s556 = scalar_select %p555, %s31, 1
          %s557 = scalar_lea.vmem %s11, %s556
        $region64: #{gnn_node_virtualnode_forward.1} parent=43 // pred_fallthru
          _
        // Predicated region
        $region65: #{gnn_node_virtualnode_forward.1} parent=43 // pred_check
          %p558 = pneg %p328
        $region66: #{gnn_node_virtualnode_forward.1} parent=43 // pred_check_branch
          %560 = sbr.rel (%p558) target = $region68
        $region67: #{gnn_node_virtualnode_forward.1} parent=43 // pred_region
          %s561 = sand.u32 %s318, 1
          %s562 = scalar_lea.sflag [#allocation9], %s561
          %s563 = sand.u32 %s318, 1
          %s564 = smul.addr %s563, 64
          %s565 = scalar_lea.vmem [#allocation8], %s564
          %s567 = ssub.s32 1024, 1024
          %568 = vsyncadd %s562, %s567
          %s569 = smul.addr %s31, 16
          %s570 = smul.addr %s569, 64
          %s571 = scalar_lea.hbm %s12, %s570
          %s572 = sshll.u32 %s565, 4
          %s573 = int_to_ptr.vmem [resolvable:$true] %s572
          %578 = dma.hbm_to_vmem [thread:$0]  %s571, 1024, %s573, %s562, 64, 64, 4
        $region68: #{gnn_node_virtualnode_forward.1} parent=43 // pred_fallthru
          _
        // Predicated region
        $region69: #{gnn_node_virtualnode_forward.1} parent=43 // pred_check
          %p579 = pneg %p354
        $region70: #{gnn_node_virtualnode_forward.1} parent=43 // pred_check_branch
          %581 = sbr.rel (%p579) target = $region72
        $region71: #{gnn_node_virtualnode_forward.1} parent=43 // pred_region
          %p582 = scmp.lt.s32.totalorder %s31, 1
          %s583 = scalar_select %p582, %s31, 1
          %s584 = scalar_lea.vmem %s13, %s583
        $region72: #{gnn_node_virtualnode_forward.1} parent=43 // pred_fallthru
          _
        // Predicated region
        $region73: #{gnn_node_virtualnode_forward.1} parent=43 // pred_check
          %p585 = pneg %p380
        $region74: #{gnn_node_virtualnode_forward.1} parent=43 // pred_check_branch
          %587 = sbr.rel (%p585) target = $region76
        $region75: #{gnn_node_virtualnode_forward.1} parent=43 // pred_region
          %s588 = sand.u32 %s31, 1
          %s589 = scalar_lea.sflag [#allocation12], %s588
          %s590 = sand.u32 %s370, 1
          %s591 = smul.addr %s590, 64
          %s592 = scalar_lea.vmem [#allocation11], %s591
          %s594 = ssub.s32 1024, 1024
          %595 = vsyncadd %s589, %s594
          %s596 = smul.addr %s31, 16
          %s597 = smul.addr %s596, 64
          %s598 = scalar_lea.hbm %s14, %s597
          %s599 = sshll.u32 %s592, 4
          %s600 = int_to_ptr.vmem [resolvable:$true] %s599
          %605 = dma.hbm_to_vmem [thread:$0]  %s598, 1024, %s600, %s589, 64, 64, 4
        $region76: #{gnn_node_virtualnode_forward.1} parent=43 // pred_fallthru
          _
        // Predicated region
        $region77: #{gnn_node_virtualnode_forward.1} parent=43 // pred_check
          %p606 = pneg %p406
        $region78: #{gnn_node_virtualnode_forward.1} parent=43 // pred_check_branch
          %608 = sbr.rel (%p606) target = $region80
        $region79: #{gnn_node_virtualnode_forward.1} parent=43 // pred_region
          %p609 = scmp.lt.s32.totalorder %s31, 1
          %s610 = scalar_select %p609, %s31, 1
          %s611 = scalar_lea.vmem %s15, %s610
        $region80: #{gnn_node_virtualnode_forward.1} parent=43 // pred_fallthru
          _
        // Predicated region
        $region81: #{gnn_node_virtualnode_forward.1} parent=43 // pred_check
          %p612 = pneg %p432
        $region82: #{gnn_node_virtualnode_forward.1} parent=43 // pred_check_branch
          %614 = sbr.rel (%p612) target = $region84
        $region83: #{gnn_node_virtualnode_forward.1} parent=43 // pred_region
          %s615 = sand.u32 %s31, 1
          %s616 = scalar_lea.sflag [#allocation12], %s615
          %s617 = sand.u32 %s422, 1
          %s618 = smul.addr %s617, 64
          %s619 = scalar_lea.vmem [#allocation13], %s618
          %s621 = ssub.s32 1024, 1024
          %622 = vsyncadd %s616, %s621
          %s623 = smul.addr %s31, 16
          %s624 = smul.addr %s623, 64
          %s625 = scalar_lea.hbm %s16, %s624
          %s626 = sshll.u32 %s619, 4
          %s627 = int_to_ptr.vmem [resolvable:$true] %s626
          %632 = dma.hbm_to_vmem [thread:$0]  %s625, 1024, %s627, %s616, 64, 64, 4
        $region84: #{gnn_node_virtualnode_forward.1} parent=43 // pred_fallthru
          _
        // Predicated region
        $region85: #{gnn_node_virtualnode_forward.1} parent=43 // pred_check
          %p633 = pneg %p458
        $region86: #{gnn_node_virtualnode_forward.1} parent=43 // pred_check_branch
          %635 = sbr.rel (%p633) target = $region88
        $region87: #{gnn_node_virtualnode_forward.1} parent=43 // pred_region
          %p636 = scmp.lt.s32.totalorder %s31, 1
          %s637 = scalar_select %p636, %s31, 1
          %s638 = scalar_lea.vmem %s17, %s637
        $region88: #{gnn_node_virtualnode_forward.1} parent=43 // pred_fallthru
          _
      $region44: #{gnn_node_virtualnode_forward.1} parent=5 // pred_fallthru
        _
      %p639 = scmp.le.s32.totalorder 1, %s31
      %p640 = scmp.lt.s32.totalorder %s31, 3
      %p641 = pnand %p639, %p640
      %p642 = pneg %p641
      // Predicated region
      $region89: #{gnn_node_virtualnode_forward.1} parent=5 // pred_check
        _
      $region90: #{gnn_node_virtualnode_forward.1} parent=5 // pred_check_branch
        %644 = sbr.rel (%p641) target = $region92
      $region91: #{gnn_node_virtualnode_forward.1} parent=5 // pred_region
        %s645 = ssub.s32 %s31, 1
        %s646 = sand.u32 %s321, 1
        %s647 = scalar_lea.sflag [#allocation9], %s646
        %s648 = sand.u32 %s321, 1
        %s649 = smul.addr %s648, 64
        %s650 = scalar_lea.vmem [#allocation8], %s649
        // Predicated region
        $region93: #{gnn_node_virtualnode_forward.1} parent=91 // pred_check
          %p651 = pneg %p334
        $region94: #{gnn_node_virtualnode_forward.1} parent=91 // pred_check_branch
          %653 = sbr.rel (%p651) target = $region96
        $region95: #{gnn_node_virtualnode_forward.1} parent=91 // pred_region
          %654 = dma.done %s647, 1024
        $region96: #{gnn_node_virtualnode_forward.1} parent=91 // pred_fallthru
          _
        %s655 = sand.u32 %s36, 1
        %s656 = scalar_lea.sflag [#allocation12], %s655
        %s657 = sand.u32 %s373, 1
        %s658 = smul.addr %s657, 64
        %s659 = scalar_lea.vmem [#allocation11], %s658
        // Predicated region
        $region97: #{gnn_node_virtualnode_forward.1} parent=91 // pred_check
          %p660 = pneg %p386
        $region98: #{gnn_node_virtualnode_forward.1} parent=91 // pred_check_branch
          %662 = sbr.rel (%p660) target = $region100
        $region99: #{gnn_node_virtualnode_forward.1} parent=91 // pred_region
          %663 = dma.done %s656, 1024
        $region100: #{gnn_node_virtualnode_forward.1} parent=91 // pred_fallthru
          _
        %s664 = sand.u32 %s36, 1
        %s665 = scalar_lea.sflag [#allocation12], %s664
        %s666 = sand.u32 %s425, 1
        %s667 = smul.addr %s666, 64
        %s668 = scalar_lea.vmem [#allocation13], %s667
        // Predicated region
        $region101: #{gnn_node_virtualnode_forward.1} parent=91 // pred_check
          %p669 = pneg %p438
        $region102: #{gnn_node_virtualnode_forward.1} parent=91 // pred_check_branch
          %671 = sbr.rel (%p669) target = $region104
        $region103: #{gnn_node_virtualnode_forward.1} parent=91 // pred_region
          %672 = dma.done %s665, 1024
        $region104: #{gnn_node_virtualnode_forward.1} parent=91 // pred_fallthru
          _
        %p673 = pneg %p52
        %p674 = pneg %p49
        %p675 = pneg %p73
        %p676 = pneg %p70
        %p677 = pneg %p94
        %p678 = pneg %p91
        %p679 = pneg %p115
        %p680 = pneg %p112
        %p681 = pneg %p136
        %p682 = pneg %p133
        %p683 = pneg %p157
        %p684 = pneg %p154
        %p685 = pneg %p178
        %p686 = pneg %p175
        %p687 = scmp.lt.s32.totalorder %s36, 1
        %s688 = scalar_select %p687, %s36, 1
        %s689 = scalar_lea.vmem %s7, %s688
        %p690 = pneg %p204
        %p691 = pneg %p201
        %p692 = scmp.lt.s32.totalorder %s36, 1
        %s693 = scalar_select %p692, %s36, 1
        %s694 = smul.addr %s693, 8
        %s695 = scalar_lea.vmem %s8, %s694
        %p696 = pneg %p230
        %p697 = pneg %p227
        %p698 = scmp.lt.s32.totalorder %s36, 1
        %s699 = scalar_select %p698, %s36, 1
        %s700 = scalar_lea.vmem %s9, %s699
        %p701 = pneg %p256
        %p702 = pneg %p253
        %p703 = scmp.lt.s32.totalorder %s36, 1
        %s704 = scalar_select %p703, %s36, 1
        %s705 = smul.addr %s704, 16
        %s706 = smul.addr %s705, 4
        %s707 = scalar_lea.vmem %s10, %s706
        %p708 = pneg %p282
        %p709 = pneg %p279
        %p710 = scmp.lt.s32.totalorder %s36, 1
        %s711 = scalar_select %p710, %s36, 1
        %s712 = scalar_lea.vmem %s11, %s711
        %p713 = pneg %p308
        %p714 = pneg %p305
        %s715 = sand.u32 %s321, 1
        %s716 = scalar_lea.sflag [#allocation9], %s715
        %s717 = sand.u32 %s321, 1
        %s718 = smul.addr %s717, 64
        %s719 = scalar_lea.vmem [#allocation8], %s718
        %p720 = pneg %p334
        %p721 = pneg %p331
        %p722 = scmp.lt.s32.totalorder %s36, 1
        %s723 = scalar_select %p722, %s36, 1
        %s724 = scalar_lea.vmem %s13, %s723
        %p725 = pneg %p360
        %p726 = pneg %p357
        %s727 = sand.u32 %s36, 1
        %s728 = scalar_lea.sflag [#allocation12], %s727
        %s729 = sand.u32 %s373, 1
        %s730 = smul.addr %s729, 64
        %s731 = scalar_lea.vmem [#allocation11], %s730
        %p732 = pneg %p386
        %p733 = pneg %p383
        %p734 = scmp.lt.s32.totalorder %s36, 1
        %s735 = scalar_select %p734, %s36, 1
        %s736 = scalar_lea.vmem %s15, %s735
        %p737 = pneg %p412
        %p738 = pneg %p409
        %s739 = sand.u32 %s36, 1
        %s740 = scalar_lea.sflag [#allocation12], %s739
        %s741 = sand.u32 %s425, 1
        %s742 = smul.addr %s741, 64
        %s743 = scalar_lea.vmem [#allocation13], %s742
        %p744 = pneg %p438
        %p745 = pneg %p435
        %p746 = scmp.lt.s32.totalorder %s36, 1
        %s747 = scalar_select %p746, %s36, 1
        %s748 = scalar_lea.vmem %s17, %s747
        %p749 = pneg %p464
        %p750 = pneg %p461
        %p751 = pneg %p485
        %p752 = pneg %p482
        %p753 = scmp.lt.s32.totalorder %s36, 1
        %s754 = scalar_select %p753, %s36, 1
        %s755 = scalar_lea.vmem %s7, %s754
        %p756 = scmp.lt.s32.totalorder %s36, 1
        %s757 = scalar_select %p756, %s36, 1
        %s758 = smul.addr %s757, 8
        %s759 = scalar_lea.vmem %s8, %s758
        %p760 = scmp.lt.s32.totalorder %s36, 1
        %s761 = scalar_select %p760, %s36, 1
        %s762 = scalar_lea.vmem %s9, %s761
        %p763 = scmp.lt.s32.totalorder %s36, 1
        %s764 = scalar_select %p763, %s36, 1
        %s765 = smul.addr %s764, 16
        %s766 = smul.addr %s765, 4
        %s767 = scalar_lea.vmem %s10, %s766
        %p768 = scmp.lt.s32.totalorder %s36, 1
        %s769 = scalar_select %p768, %s36, 1
        %s770 = scalar_lea.vmem %s11, %s769
        %p771 = scmp.lt.s32.totalorder %s36, 1
        %s772 = scalar_select %p771, %s36, 1
        %s773 = scalar_lea.vmem %s13, %s772
        %p774 = scmp.lt.s32.totalorder %s36, 1
        %s775 = scalar_select %p774, %s36, 1
        %s776 = scalar_lea.vmem %s15, %s775
        %p777 = scmp.lt.s32.totalorder %s36, 1
        %s778 = scalar_select %p777, %s36, 1
        %s779 = scalar_lea.vmem %s17, %s778
        %p781 = scmp.eq.s32.totalorder %s36, 1
        %p782 = scmp.eq.s32.totalorder %s36, 0
        // Predicated region
        $region105: #{gnn_node_virtualnode_forward.1} parent=91 // pred_check
          %p783 = pneg %p782
        $region106: #{gnn_node_virtualnode_forward.1} parent=91 // pred_check_branch
          %785 = sbr.rel (%p783) target = $region108
        $region107: #{gnn_node_virtualnode_forward.1} parent=91 // pred_region
          %v786 = vld [vmem:[%s2] sm:$0xff]
          %v787 = vld [vmem:[%s2 + $0x8] sm:$0xff]
          %v788 = vlaneseq
          %v789 = vand.u32 %v788, 127
          %790 = vset.pattern.permute.xlu0 0
          %791 = vperm.xlu0 %790, %v786
          %v792 = vpop.permute.xlu0 %791
          %793 = vset.pattern.permute.xlu0 0
          %794 = vperm.xlu0 %793, %v787
          %v795 = vpop.permute.xlu0 %794
          %vm796 = vcmp.eq.s32.totalorder %v792, %v789
          %vm797 = vcmp.eq.s32.totalorder %v795, %v789
          %v798 = vsel %vm796, 1, 0
          %v799 = vsel %vm797, 1, 0
          %v800 = vcvt.s32.f32 %v798
          %v801 = vcvt.s32.f32 %v799
          %vm802 = vcmask 64512
          %803 = vst.msk [vmem:[#allocation4] sm:$0xff] %vm802, %v800
          %804 = vst.msk [vmem:[#allocation4 + $0x8] sm:$0xff] %vm802, %v801
          %v805 = vlaneseq
          %v806 = vshrl.u32 %v805, 7
          %v807 = vld [vmem:[%s3] sm:$0x1]
          %v808 = vlaneseq
          %v809 = vshrl.u32 %v808, 7
          %v810 = vsub.s32 0, %v809
          %v811 = vrot.slane %v807, %v810
          %vm812 = vcmp.eq.s32.totalorder %v806, %v811
          %v813 = vsel %vm812, 1, 0
          %v814 = vcvt.s32.f32 %v813
          %vm815 = vcmask 130048
          %816 = vst.msk [vmem:[#allocation5] sm:$0xff] %vm815, %v814
          %v817 = vld [vmem:[%s4] sm:$0xff]
          %v818 = vld [vmem:[%s4 + $0x8] sm:$0xff]
          %v819 = vld [vmem:[%s4 + $0x10] sm:$0xff]
          %v820 = vld [vmem:[%s4 + $0x18] sm:$0xff]
          %821 = vset.pattern.permute.xlu0 0
          %822 = vperm.xlu0 %821, %v817
          %v823 = vpop.permute.xlu0 %822
          %824 = vset.pattern.permute.xlu0 0
          %825 = vperm.xlu0 %824, %v818
          %v826 = vpop.permute.xlu0 %825
          %827 = vset.pattern.permute.xlu0 0
          %828 = vperm.xlu0 %827, %v819
          %v829 = vpop.permute.xlu0 %828
          %830 = vset.pattern.permute.xlu0 0
          %831 = vperm.xlu0 %830, %v820
          %v832 = vpop.permute.xlu0 %831
          %vm833 = vcmp.eq.s32.totalorder %v823, %v789
          %vm834 = vcmp.eq.s32.totalorder %v826, %v789
          %vm835 = vcmp.eq.s32.totalorder %v829, %v789
          %vm836 = vcmp.eq.s32.totalorder %v832, %v789
          %v837 = vsel %vm833, 1, 0
          %v838 = vsel %vm834, 1, 0
          %v839 = vsel %vm835, 1, 0
          %v840 = vsel %vm836, 1, 0
          %v841 = vcvt.s32.f32 %v837
          %v842 = vcvt.s32.f32 %v838
          %v843 = vcvt.s32.f32 %v839
          %v844 = vcvt.s32.f32 %v840
          %v845 = vpack.c.bf16 %v842, %v841
          %v846 = vpack.c.bf16 %v844, %v843
          %v849 = vunpack.c.l.b16 %v845
          %v850 = vunpack.c.h.b16 %v845
          %v851 = vunpack.c.l.b16 %v846
          %v852 = vunpack.c.h.b16 %v846
          %v853 = vpack.c.b16 %v849, %v849
          %v854 = vpack.c.b16 %v850, %v850
          %v855 = vpack.c.b16 %v851, %v851
          %v856 = vpack.c.b16 %v852, %v852
          %vm861 = vcmask 125952
          %862 = vst.msk [vmem:[#allocation6] sm:$0xf] %vm861, %v853
          %863 = vst.msk [vmem:[#allocation6 + $0x4] sm:$0xf] %vm861, %v854
          %864 = vst.msk [vmem:[#allocation6 + $0x8] sm:$0xf] %vm861, %v855
          %865 = vst.msk [vmem:[#allocation6 + $0xc] sm:$0xf] %vm861, %v856
          %v866 = vadd.s32 %v806, 8
          %v867 = vld [vmem:[%s5] sm:$0x1]
          %v868 = vlaneseq
          %v869 = vshrl.u32 %v868, 7
          %v870 = vsub.s32 0, %v869
          %v871 = vrot.slane %v867, %v870
          %vm872 = vcmp.eq.s32.totalorder %v806, %v871
          %vm873 = vcmp.eq.s32.totalorder %v866, %v871
          %v874 = vsel %vm872, 1, 0
          %v875 = vsel %vm873, 1, 0
          %v876 = vcvt.s32.f32 %v874
          %v877 = vcvt.s32.f32 %v875
          %v878 = vpack.c.bf16 %v877, %v876
          %v880 = vunpack.c.l.b16 %v878
          %v881 = vunpack.c.h.b16 %v878
          %v882 = vpack.c.b16 %v880, %v880
          %v883 = vpack.c.b16 %v881, %v881
          %vm886 = vcmask 257024
          %887 = vst.msk [vmem:[#allocation7] sm:$0xf] %vm886, %v882
          %888 = vst.msk [vmem:[#allocation7 + $0x4] sm:$0xf] %vm886, %v883
          %v889 = vld [vmem:[%s0] sm:$0xff]
          %v890 = vld [vmem:[%s0 + $0x8] sm:$0xff]
          %891 = vst [vmem:[#allocation2] sm:$0xff] %v889
          %892 = vst [vmem:[#allocation2 + $0x8] sm:$0xff] %v890
          %v893 = vld [vmem:[%s1] sm:$0xff]
          %894 = vst [vmem:[#allocation3] sm:$0xff] %v893
        $region108: #{gnn_node_virtualnode_forward.1} parent=91 // pred_fallthru
          _
        %v895 = vld [vmem:[#allocation2] sm:$0xff]
        %v896 = vld [vmem:[#allocation2 + $0x8] sm:$0xff]
        %v897 = vld [vmem:[#allocation3] sm:$0xff]
        %v898 = vld [vmem:[#allocation4] sm:$0xff]
        %v899 = vld [vmem:[#allocation4 + $0x8] sm:$0xff]
        %vm900 = vcmask 64512
        %v902 = vsel %vm900, %v898, 0
        %v905 = vsel %vm900, %v899, 0
        %907 = vmatprep.subr.mxu0 0.0
        %908 = vmatpush1.msra.mxu0 0.0
        %909 = vmatprep.subr.mxu0 0.0
        %910 = vmatpush1.msra.mxu0 0.0
        %911 = vmatprep.subr.mxu0 0.0
        %912 = vmatpush1.msra.mxu0 0.0
        %913 = vmatprep.subr.mxu0 0.0
        %914 = vmatpush1.msra.mxu0 0.0
        %915 = vmatprep.subr.mxu0 0.0
        %916 = vmatpush1.msra.mxu0 0.0
        %917 = vmatprep.subr.mxu0 0.0
        %918 = vmatpush1.msra.mxu0 0.0
        %919 = vmatprep.subr.mxu0 0.0
        %920 = vmatpush1.msra.mxu0 0.0
        %921 = vmatprep.subr.mxu0 0.0
        %922 = vmatpush1.msra.mxu0 0.0
        %923 = vmatprep.subr.mxu0 0.0
        %924 = vmatpush1.msra.mxu0 0.0
        %925 = vmatprep.subr.mxu0 0.0
        %926 = vmatpush1.msra.mxu0 0.0
        %927 = vmatprep.subr.mxu0 0.0
        %928 = vmatpush1.msra.mxu0 0.0
        %929 = vmatprep.subr.mxu0 0.0
        %930 = vmatpush1.msra.mxu0 0.0
        %931 = vmatprep.subr.mxu0 0.0
        %932 = vmatpush1.msra.mxu0 0.0
        %933 = vmatprep.subr.mxu0 0.0
        %934 = vmatpush1.msra.mxu0 0.0
        %935 = vmatprep.subr.mxu0 0.0
        %936 = vmatpush1.msra.mxu0 0.0
        %937 = vmatprep.subr.mxu0 0.0
        %938 = vmatpush1.msra.mxu0 %v897
        %939 = vmatprep.subr.mxu0 0.0
        %940 = vmatpush2.msra.mxu0 0.0
        %941 = vmatprep.subr.mxu0 0.0
        %942 = vmatpush2.msra.mxu0 0.0
        %943 = vmatprep.subr.mxu0 0.0
        %944 = vmatpush2.msra.mxu0 0.0
        %945 = vmatprep.subr.mxu0 0.0
        %946 = vmatpush2.msra.mxu0 0.0
        %947 = vmatprep.subr.mxu0 0.0
        %948 = vmatpush2.msra.mxu0 0.0
        %949 = vmatprep.subr.mxu0 0.0
        %950 = vmatpush2.msra.mxu0 0.0
        %951 = vmatprep.subr.mxu0 0.0
        %952 = vmatpush2.msra.mxu0 0.0
        %953 = vmatprep.subr.mxu0 0.0
        %954 = vmatpush2.msra.mxu0 0.0
        %955 = vmatprep.subr.mxu0 0.0
        %956 = vmatpush2.msra.mxu0 0.0
        %957 = vmatprep.subr.mxu0 0.0
        %958 = vmatpush2.msra.mxu0 0.0
        %959 = vmatprep.subr.mxu0 0.0
        %960 = vmatpush2.msra.mxu0 0.0
        %961 = vmatprep.subr.mxu0 0.0
        %962 = vmatpush2.msra.mxu0 0.0
        %963 = vmatprep.subr.mxu0 0.0
        %964 = vmatpush2.msra.mxu0 0.0
        %965 = vmatprep.subr.mxu0 0.0
        %966 = vmatpush2.msra.mxu0 0.0
        %967 = vmatprep.subr.mxu0 0.0
        %968 = vmatpush2.msra.mxu0 0.0
        %969 = vmatprep.subr.mxu0 0.0
        %970 = vmatpush2.msra.mxu0 0.0
        %971 = vmatprep.mubr.f32.mxu0 0.0
        %972 = vmatmul.mubr.f32.gmra.mxu0 %v902
        %v973 = vpop.f32.mrf.mxu0
        %v974 = vadd.f32 0.0, %v973
        %v975 = vpop.f32.mrf.mxu0
        %976 = vmatprep.mubr.f32.mxu0 0.0
        %977 = vmatmul.mubr.f32.gmra.mxu0 %v905
        %v978 = vpop.f32.mrf.mxu0
        %v979 = vadd.f32 0.0, %v978
        %v980 = vpop.f32.mrf.mxu0
        %981 = vdwg.mxu0
        %v982 = vadd.f32 %v895, %v974
        %v983 = vadd.f32 %v896, %v979
        %v984 = vpack.c.bf16 %v983, %v982
        %v985 = vld [vmem:[%s6] sm:$0xff]
        %v986 = vld [vmem:[%s6 + $0x8] sm:$0xff]
        %v987 = vld [vmem:[%s6 + $0x10] sm:$0xff]
        %v988 = vld [vmem:[%s6 + $0x18] sm:$0xff]
        %v989 = vld [vmem:[%s759] sm:$0xff]
        %v990 = vld [vmem:[%s762] sm:$0x1]
        %v992 = vlaneseq
        %v993 = vshrl.u32 %v992, 7
        %v994 = vsub.s32 0, %v993
        %v995 = vrot.slane %v990, %v994
        %v998 = vsel %vm900, %v985, 0
        %v1001 = vsel %vm900, %v986, 0
        %v1004 = vsel %vm900, %v987, 0
        %v1007 = vsel %vm900, %v988, 0
        %1009 = vmatprep.subr.mxu0 0.0
        %1010 = vmatpush1.msra.mxu0 0.0
        %1011 = vmatprep.subr.mxu0 0.0
        %1012 = vmatpush1.msra.mxu0 0.0
        %1013 = vmatprep.subr.mxu0 0.0
        %1014 = vmatpush1.msra.mxu0 0.0
        %1015 = vmatprep.subr.mxu0 0.0
        %1016 = vmatpush1.msra.mxu0 0.0
        %1017 = vmatprep.subr.mxu0 0.0
        %1018 = vmatpush1.msra.mxu0 0.0
        %1019 = vmatprep.subr.mxu0 0.0
        %1020 = vmatpush1.msra.mxu0 0.0
        %1021 = vmatprep.subr.mxu0 0.0
        %1022 = vmatpush1.msra.mxu0 0.0
        %1023 = vmatprep.subr.mxu0 0.0
        %1024 = vmatpush1.msra.mxu0 0.0
        %1025 = vmatprep.subr.mxu0 0.0
        %1026 = vmatpush1.msra.mxu0 0.0
        %1027 = vmatprep.subr.mxu0 0.0
        %1028 = vmatpush1.msra.mxu0 0.0
        %1029 = vmatprep.subr.mxu0 0.0
        %1030 = vmatpush1.msra.mxu0 0.0
        %1031 = vmatprep.subr.mxu0 0.0
        %1032 = vmatpush1.msra.mxu0 0.0
        %1033 = vmatprep.subr.mxu0 0.0
        %1034 = vmatpush1.msra.mxu0 0.0
        %1035 = vmatprep.subr.mxu0 0.0
        %1036 = vmatpush1.msra.mxu0 0.0
        %1037 = vmatprep.subr.mxu0 0.0
        %1038 = vmatpush1.msra.mxu0 0.0
        %1039 = vmatprep.subr.mxu0 0.0
        %1040 = vmatpush1.msra.mxu0 %v989
        %1041 = vmatprep.subr.mxu0 0.0
        %1042 = vmatpush2.msra.mxu0 0.0
        %1043 = vmatprep.subr.mxu0 0.0
        %1044 = vmatpush2.msra.mxu0 0.0
        %1045 = vmatprep.subr.mxu0 0.0
        %1046 = vmatpush2.msra.mxu0 0.0
        %1047 = vmatprep.subr.mxu0 0.0
        %1048 = vmatpush2.msra.mxu0 0.0
        %1049 = vmatprep.subr.mxu0 0.0
        %1050 = vmatpush2.msra.mxu0 0.0
        %1051 = vmatprep.subr.mxu0 0.0
        %1052 = vmatpush2.msra.mxu0 0.0
        %1053 = vmatprep.subr.mxu0 0.0
        %1054 = vmatpush2.msra.mxu0 0.0
        %1055 = vmatprep.subr.mxu0 0.0
        %1056 = vmatpush2.msra.mxu0 0.0
        %1057 = vmatprep.subr.mxu0 0.0
        %1058 = vmatpush2.msra.mxu0 0.0
        %1059 = vmatprep.subr.mxu0 0.0
        %1060 = vmatpush2.msra.mxu0 0.0
        %1061 = vmatprep.subr.mxu0 0.0
        %1062 = vmatpush2.msra.mxu0 0.0
        %1063 = vmatprep.subr.mxu0 0.0
        %1064 = vmatpush2.msra.mxu0 0.0
        %1065 = vmatprep.subr.mxu0 0.0
        %1066 = vmatpush2.msra.mxu0 0.0
        %1067 = vmatprep.subr.mxu0 0.0
        %1068 = vmatpush2.msra.mxu0 0.0
        %1069 = vmatprep.subr.mxu0 0.0
        %1070 = vmatpush2.msra.mxu0 0.0
        %1071 = vmatprep.subr.mxu0 0.0
        %1072 = vmatpush2.msra.mxu0 0.0
        %1073 = vmatprep.mubr.f32.mxu0 0.0
        %1074 = vmatmul.mubr.f32.gmra.mxu0 %v998
        %v1075 = vpop.f32.mrf.mxu0
        %v1076 = vadd.f32 %v995, %v1075
        %v1077 = vpop.f32.mrf.mxu0
        %1078 = vmatprep.mubr.f32.mxu0 0.0
        %1079 = vmatmul.mubr.f32.gmra.mxu0 %v1001
        %v1080 = vpop.f32.mrf.mxu0
        %v1081 = vadd.f32 %v995, %v1080
        %v1082 = vpop.f32.mrf.mxu0
        %1083 = vmatprep.mubr.f32.mxu0 0.0
        %1084 = vmatmul.mubr.f32.gmra.mxu0 %v1004
        %v1085 = vpop.f32.mrf.mxu0
        %v1086 = vadd.f32 %v995, %v1085
        %v1087 = vpop.f32.mrf.mxu0
        %1088 = vmatprep.mubr.f32.mxu0 0.0
        %1089 = vmatmul.mubr.f32.gmra.mxu0 %v1007
        %v1090 = vpop.f32.mrf.mxu0
        %v1091 = vadd.f32 %v995, %v1090
        %v1092 = vpop.f32.mrf.mxu0
        %1093 = vdwg.mxu0
        %v1094 = vld [vmem:[#allocation6] sm:$0xf]
        %v1095 = vld [vmem:[#allocation6 + $0x4] sm:$0xf]
        %v1096 = vld [vmem:[#allocation6 + $0x8] sm:$0xf]
        %v1097 = vld [vmem:[#allocation6 + $0xc] sm:$0xf]
        %v1102 = vunpack.c.l.b16 %v1094
        %v1103 = vunpack.c.l.b16 %v1095
        %v1104 = vunpack.c.l.b16 %v1096
        %v1105 = vunpack.c.l.b16 %v1097
        %v1106 = vpack.c.b16 %v1103, %v1102
        %v1107 = vpack.c.b16 %v1105, %v1104
        %vm1108 = vcmask 130048
        %v1110 = vsel %vm1108, %v1106, 0
        %v1113 = vsel %vm1108, %v1107, 0
        %1115 = vmatprep.subr.bf16.mxu0 0
        %1116 = vmatpush1.bf16.msra.mxu0 0
        %1117 = vmatprep.subr.bf16.mxu0 0
        %1118 = vmatpush1.bf16.msra.mxu0 0
        %1119 = vmatprep.subr.bf16.mxu0 0
        %1120 = vmatpush1.bf16.msra.mxu0 0
        %1121 = vmatprep.subr.bf16.mxu0 0
        %1122 = vmatpush1.bf16.msra.mxu0 0
        %1123 = vmatprep.subr.bf16.mxu0 0
        %1124 = vmatpush1.bf16.msra.mxu0 0
        %1125 = vmatprep.subr.bf16.mxu0 0
        %1126 = vmatpush1.bf16.msra.mxu0 0
        %1127 = vmatprep.subr.bf16.mxu0 0
        %1128 = vmatpush1.bf16.msra.mxu0 0
        %1129 = vmatprep.subr.bf16.mxu0 0
        %1130 = vmatpush1.bf16.msra.mxu0 %v984
        %1131 = vmatprep.subr.bf16.mxu0 0
        %1132 = vmatpush2.bf16.msra.mxu0 0
        %1133 = vmatprep.subr.bf16.mxu0 0
        %1134 = vmatpush2.bf16.msra.mxu0 0
        %1135 = vmatprep.subr.bf16.mxu0 0
        %1136 = vmatpush2.bf16.msra.mxu0 0
        %1137 = vmatprep.subr.bf16.mxu0 0
        %1138 = vmatpush2.bf16.msra.mxu0 0
        %1139 = vmatprep.subr.bf16.mxu0 0
        %1140 = vmatpush2.bf16.msra.mxu0 0
        %1141 = vmatprep.subr.bf16.mxu0 0
        %1142 = vmatpush2.bf16.msra.mxu0 0
        %1143 = vmatprep.subr.bf16.mxu0 0
        %1144 = vmatpush2.bf16.msra.mxu0 0
        %1145 = vmatprep.subr.bf16.mxu0 0
        %1146 = vmatpush2.bf16.msra.mxu0 0
        %1147 = vmatprep.mubr.bf16.mxu0 0
        %1148 = vmatmul.mubr.bf16.gmra.mxu0 %v1110
        %v1149 = vpop.f32.mrf.mxu0
        %v1150 = vadd.f32 %v1076, %v1149
        %v1151 = vpop.f32.mrf.mxu0
        %v1152 = vpop.f32.mrf.mxu0
        %v1153 = vadd.f32 %v1081, %v1152
        %v1154 = vpop.f32.mrf.mxu0
        %1155 = vmatprep.mubr.bf16.mxu0 0
        %1156 = vmatmul.mubr.bf16.gmra.mxu0 %v1113
        %v1157 = vpop.f32.mrf.mxu0
        %v1158 = vadd.f32 %v1086, %v1157
        %v1159 = vpop.f32.mrf.mxu0
        %v1160 = vpop.f32.mrf.mxu0
        %v1161 = vadd.f32 %v1091, %v1160
        %v1162 = vpop.f32.mrf.mxu0
        %1163 = vdwg.mxu0
        %v1164 = vmax.f32 %v1150, 0.0
        %v1165 = vmax.f32 %v1153, 0.0
        %v1166 = vmax.f32 %v1158, 0.0
        %v1167 = vmax.f32 %v1161, 0.0
        %v1168 = vld [vmem:[#allocation7] sm:$0xf]
        %v1169 = vld [vmem:[#allocation7 + $0x4] sm:$0xf]
        %v1170 = vpack.c.bf16 %v1165, %v1164
        %v1171 = vpack.c.bf16 %v1167, %v1166
        %v1174 = vunpack.c.l.b16 %v1168
        %v1175 = vunpack.c.l.b16 %v1169
        %v1176 = vpack.c.b16 %v1175, %v1174
        %vm1177 = vcmask 261120
        %v1179 = vsel %vm1177, %v1176, 0
        %1181 = vmatprep.subr.bf16.mxu0 0
        %1182 = vmatpush1.bf16.msra.mxu0 0
        %1183 = vmatprep.subr.bf16.mxu0 0
        %1184 = vmatpush1.bf16.msra.mxu0 0
        %1185 = vmatprep.subr.bf16.mxu0 0
        %1186 = vmatpush1.bf16.msra.mxu0 0
        %1187 = vmatprep.subr.bf16.mxu0 0
        %1188 = vmatpush1.bf16.msra.mxu0 0
        %1189 = vmatprep.subr.bf16.mxu0 0
        %1190 = vmatpush1.bf16.msra.mxu0 0
        %1191 = vmatprep.subr.bf16.mxu0 0
        %1192 = vmatpush1.bf16.msra.mxu0 0
        %1193 = vmatprep.subr.bf16.mxu0 0
        %1194 = vmatpush1.bf16.msra.mxu0 %v1171
        %1195 = vmatprep.subr.bf16.mxu0 0
        %1196 = vmatpush1.bf16.msra.mxu0 %v1170
        %1197 = vmatprep.subr.bf16.mxu0 0
        %1198 = vmatpush2.bf16.msra.mxu0 0
        %1199 = vmatprep.subr.bf16.mxu0 0
        %1200 = vmatpush2.bf16.msra.mxu0 0
        %1201 = vmatprep.subr.bf16.mxu0 0
        %1202 = vmatpush2.bf16.msra.mxu0 0
        %1203 = vmatprep.subr.bf16.mxu0 0
        %1204 = vmatpush2.bf16.msra.mxu0 0
        %1205 = vmatprep.subr.bf16.mxu0 0
        %1206 = vmatpush2.bf16.msra.mxu0 0
        %1207 = vmatprep.subr.bf16.mxu0 0
        %1208 = vmatpush2.bf16.msra.mxu0 0
        %1209 = vmatprep.subr.bf16.mxu0 0
        %1210 = vmatpush2.bf16.msra.mxu0 0
        %1211 = vmatprep.subr.bf16.mxu0 0
        %1212 = vmatpush2.bf16.msra.mxu0 0
        %1213 = vmatprep.mubr.bf16.mxu0 0
        %1214 = vmatmul.mubr.bf16.gmra.mxu0 %v1179
        %v1215 = vpop.f32.mrf.mxu0
        %v1216 = vadd.f32 0.0, %v1215
        %v1217 = vpop.f32.mrf.mxu0
        %v1218 = vpop.f32.mrf.mxu0
        %v1219 = vadd.f32 0.0, %v1218
        %v1220 = vpop.f32.mrf.mxu0
        %1221 = vdwg.mxu0
        %v1222 = vld [vmem:[%s755] sm:$0x1]
        %v1224 = vlaneseq
        %v1225 = vshrl.u32 %v1224, 7
        %v1226 = vsub.s32 0, %v1225
        %v1227 = vrot.slane %v1222, %v1226
        %v1229 = vmul.f32 %v1227, %v982
        %v1230 = vmul.f32 %v1227, %v983
        %v1231 = vadd.f32 %v1229, %v1216
        %v1232 = vadd.f32 %v1230, %v1219
        %v1233 = vpack.c.bf16 %v1232, %v1231
        %v1234 = vld [vmem:[%s767] sm:$0xf]
        %v1235 = vld [vmem:[%s767 + $0x4] sm:$0xf]
        %v1236 = vld [vmem:[%s767 + $0x8] sm:$0xf]
        %v1237 = vld [vmem:[%s767 + $0xc] sm:$0xf]
        %v1238 = vld [vmem:[%s767 + $0x10] sm:$0xf]
        %v1239 = vld [vmem:[%s767 + $0x14] sm:$0xf]
        %v1240 = vld [vmem:[%s767 + $0x18] sm:$0xf]
        %v1241 = vld [vmem:[%s767 + $0x1c] sm:$0xf]
        %v1242 = vld [vmem:[%s767 + $0x20] sm:$0xf]
        %v1243 = vld [vmem:[%s767 + $0x24] sm:$0xf]
        %v1244 = vld [vmem:[%s767 + $0x28] sm:$0xf]
        %v1245 = vld [vmem:[%s767 + $0x2c] sm:$0xf]
        %v1246 = vld [vmem:[%s767 + $0x30] sm:$0xf]
        %v1247 = vld [vmem:[%s767 + $0x34] sm:$0xf]
        %v1248 = vld [vmem:[%s767 + $0x38] sm:$0xf]
        %v1249 = vld [vmem:[%s767 + $0x3c] sm:$0xf]
        %v1250 = vld [vmem:[%s770] sm:$0x1]
        %v1252 = vlaneseq
        %v1253 = vshrl.u32 %v1252, 7
        %v1254 = vsub.s32 0, %v1253
        %v1255 = vrot.slane %v1250, %v1254
        %v1273 = vunpack.c.l.b16 %v1234
        %v1274 = vunpack.c.l.b16 %v1235
        %v1275 = vunpack.c.l.b16 %v1236
        %v1276 = vunpack.c.l.b16 %v1237
        %v1277 = vunpack.c.l.b16 %v1238
        %v1278 = vunpack.c.l.b16 %v1239
        %v1279 = vunpack.c.l.b16 %v1240
        %v1280 = vunpack.c.l.b16 %v1241
        %v1281 = vunpack.c.l.b16 %v1242
        %v1282 = vunpack.c.l.b16 %v1243
        %v1283 = vunpack.c.l.b16 %v1244
        %v1284 = vunpack.c.l.b16 %v1245
        %v1285 = vunpack.c.l.b16 %v1246
        %v1286 = vunpack.c.l.b16 %v1247
        %v1287 = vunpack.c.l.b16 %v1248
        %v1288 = vunpack.c.l.b16 %v1249
        %v1289 = vpack.c.b16 %v1274, %v1273
        %v1290 = vpack.c.b16 %v1276, %v1275
        %v1291 = vpack.c.b16 %v1278, %v1277
        %v1292 = vpack.c.b16 %v1280, %v1279
        %v1293 = vpack.c.b16 %v1282, %v1281
        %v1294 = vpack.c.b16 %v1284, %v1283
        %v1295 = vpack.c.b16 %v1286, %v1285
        %v1296 = vpack.c.b16 %v1288, %v1287
        %1305 = vmatprep.subr.bf16.mxu0 0
        %1306 = vmatpush1.bf16.msra.mxu0 %v1296
        %1307 = vmatprep.subr.bf16.mxu0 0
        %1308 = vmatpush1.bf16.msra.mxu0 %v1295
        %1309 = vmatprep.subr.bf16.mxu0 0
        %1310 = vmatpush1.bf16.msra.mxu0 %v1294
        %1311 = vmatprep.subr.bf16.mxu0 0
        %1312 = vmatpush1.bf16.msra.mxu0 %v1293
        %1313 = vmatprep.subr.bf16.mxu0 0
        %1314 = vmatpush1.bf16.msra.mxu0 %v1292
        %1315 = vmatprep.subr.bf16.mxu0 0
        %1316 = vmatpush1.bf16.msra.mxu0 %v1291
        %1317 = vmatprep.subr.bf16.mxu0 0
        %1318 = vmatpush1.bf16.msra.mxu0 %v1290
        %1319 = vmatprep.subr.bf16.mxu0 0
        %1320 = vmatpush1.bf16.msra.mxu0 %v1289
        %1321 = vmatprep.subr.bf16.mxu0 0
        %1322 = vmatpush2.bf16.msra.mxu0 0
        %1323 = vmatprep.subr.bf16.mxu0 0
        %1324 = vmatpush2.bf16.msra.mxu0 0
        %1325 = vmatprep.subr.bf16.mxu0 0
        %1326 = vmatpush2.bf16.msra.mxu0 0
        %1327 = vmatprep.subr.bf16.mxu0 0
        %1328 = vmatpush2.bf16.msra.mxu0 0
        %1329 = vmatprep.subr.bf16.mxu0 0
        %1330 = vmatpush2.bf16.msra.mxu0 0
        %1331 = vmatprep.subr.bf16.mxu0 0
        %1332 = vmatpush2.bf16.msra.mxu0 0
        %1333 = vmatprep.subr.bf16.mxu0 0
        %1334 = vmatpush2.bf16.msra.mxu0 0
        %1335 = vmatprep.subr.bf16.mxu0 0
        %1336 = vmatpush2.bf16.msra.mxu0 0
        %1337 = vmatprep.mubr.bf16.mxu0 0
        %1338 = vmatmul.mubr.bf16.gmra.mxu0 %v1233
        %v1339 = vpop.f32.mrf.mxu0
        %v1340 = vadd.f32 %v1255, %v1339
        %v1341 = vpop.f32.mrf.mxu0
        %v1342 = vpop.f32.mrf.mxu0
        %v1343 = vadd.f32 %v1255, %v1342
        %v1344 = vpop.f32.mrf.mxu0
        %1345 = vdwg.mxu0
        %v1346 = vmax.f32 %v1340, 0.0
        %v1347 = vmax.f32 %v1343, 0.0
        %v1348 = vpack.c.bf16 %v1347, %v1346
        %v1349 = vld [vmem:[%s650] sm:$0xf]
        %v1350 = vld [vmem:[%s650 + $0x4] sm:$0xf]
        %v1351 = vld [vmem:[%s650 + $0x8] sm:$0xf]
        %v1352 = vld [vmem:[%s650 + $0xc] sm:$0xf]
        %v1353 = vld [vmem:[%s650 + $0x10] sm:$0xf]
        %v1354 = vld [vmem:[%s650 + $0x14] sm:$0xf]
        %v1355 = vld [vmem:[%s650 + $0x18] sm:$0xf]
        %v1356 = vld [vmem:[%s650 + $0x1c] sm:$0xf]
        %v1357 = vld [vmem:[%s650 + $0x20] sm:$0xf]
        %v1358 = vld [vmem:[%s650 + $0x24] sm:$0xf]
        %v1359 = vld [vmem:[%s650 + $0x28] sm:$0xf]
        %v1360 = vld [vmem:[%s650 + $0x2c] sm:$0xf]
        %v1361 = vld [vmem:[%s650 + $0x30] sm:$0xf]
        %v1362 = vld [vmem:[%s650 + $0x34] sm:$0xf]
        %v1363 = vld [vmem:[%s650 + $0x38] sm:$0xf]
        %v1364 = vld [vmem:[%s650 + $0x3c] sm:$0xf]
        %v1365 = vld [vmem:[%s773] sm:$0x1]
        %v1367 = vlaneseq
        %v1368 = vshrl.u32 %v1367, 7
        %v1369 = vsub.s32 0, %v1368
        %v1370 = vrot.slane %v1365, %v1369
        %v1388 = vunpack.c.l.b16 %v1349
        %v1389 = vunpack.c.l.b16 %v1350
        %v1390 = vunpack.c.l.b16 %v1351
        %v1391 = vunpack.c.l.b16 %v1352
        %v1392 = vunpack.c.l.b16 %v1353
        %v1393 = vunpack.c.l.b16 %v1354
        %v1394 = vunpack.c.l.b16 %v1355
        %v1395 = vunpack.c.l.b16 %v1356
        %v1396 = vunpack.c.l.b16 %v1357
        %v1397 = vunpack.c.l.b16 %v1358
        %v1398 = vunpack.c.l.b16 %v1359
        %v1399 = vunpack.c.l.b16 %v1360
        %v1400 = vunpack.c.l.b16 %v1361
        %v1401 = vunpack.c.l.b16 %v1362
        %v1402 = vunpack.c.l.b16 %v1363
        %v1403 = vunpack.c.l.b16 %v1364
        %v1404 = vpack.c.b16 %v1389, %v1388
        %v1405 = vpack.c.b16 %v1391, %v1390
        %v1406 = vpack.c.b16 %v1393, %v1392
        %v1407 = vpack.c.b16 %v1395, %v1394
        %v1408 = vpack.c.b16 %v1397, %v1396
        %v1409 = vpack.c.b16 %v1399, %v1398
        %v1410 = vpack.c.b16 %v1401, %v1400
        %v1411 = vpack.c.b16 %v1403, %v1402
        %1420 = vmatprep.subr.bf16.mxu0 0
        %1421 = vmatpush1.bf16.msra.mxu0 %v1411
        %1422 = vmatprep.subr.bf16.mxu0 0
        %1423 = vmatpush1.bf16.msra.mxu0 %v1410
        %1424 = vmatprep.subr.bf16.mxu0 0
        %1425 = vmatpush1.bf16.msra.mxu0 %v1409
        %1426 = vmatprep.subr.bf16.mxu0 0
        %1427 = vmatpush1.bf16.msra.mxu0 %v1408
        %1428 = vmatprep.subr.bf16.mxu0 0
        %1429 = vmatpush1.bf16.msra.mxu0 %v1407
        %1430 = vmatprep.subr.bf16.mxu0 0
        %1431 = vmatpush1.bf16.msra.mxu0 %v1406
        %1432 = vmatprep.subr.bf16.mxu0 0
        %1433 = vmatpush1.bf16.msra.mxu0 %v1405
        %1434 = vmatprep.subr.bf16.mxu0 0
        %1435 = vmatpush1.bf16.msra.mxu0 %v1404
        %1436 = vmatprep.subr.bf16.mxu0 0
        %1437 = vmatpush2.bf16.msra.mxu0 0
        %1438 = vmatprep.subr.bf16.mxu0 0
        %1439 = vmatpush2.bf16.msra.mxu0 0
        %1440 = vmatprep.subr.bf16.mxu0 0
        %1441 = vmatpush2.bf16.msra.mxu0 0
        %1442 = vmatprep.subr.bf16.mxu0 0
        %1443 = vmatpush2.bf16.msra.mxu0 0
        %1444 = vmatprep.subr.bf16.mxu0 0
        %1445 = vmatpush2.bf16.msra.mxu0 0
        %1446 = vmatprep.subr.bf16.mxu0 0
        %1447 = vmatpush2.bf16.msra.mxu0 0
        %1448 = vmatprep.subr.bf16.mxu0 0
        %1449 = vmatpush2.bf16.msra.mxu0 0
        %1450 = vmatprep.subr.bf16.mxu0 0
        %1451 = vmatpush2.bf16.msra.mxu0 0
        %1452 = vmatprep.mubr.bf16.mxu0 0
        %1453 = vmatmul.mubr.bf16.gmra.mxu0 %v1348
        %v1454 = vpop.f32.mrf.mxu0
        %v1455 = vadd.f32 %v1370, %v1454
        %v1456 = vpop.f32.mrf.mxu0
        %v1457 = vpop.f32.mrf.mxu0
        %v1458 = vadd.f32 %v1370, %v1457
        %v1459 = vpop.f32.mrf.mxu0
        %1460 = vdwg.mxu0
        %v1461 = vmax.f32 %v1455, 0.0
        %v1462 = vmax.f32 %v1458, 0.0
        %p1463 = scmp.ne.s32.totalorder %s36, 1
        // Predicated region
        $region109: #{gnn_node_virtualnode_forward.1} parent=91 // pred_check
          %p1464 = pneg %p1463
        $region110: #{gnn_node_virtualnode_forward.1} parent=91 // pred_check_branch
          %1466 = sbr.rel (%p1464) target = $region112
        $region111: #{gnn_node_virtualnode_forward.1} parent=91 // pred_region
          %1467 = vst [vmem:[#allocation2] sm:$0xff] %v1461
          %1468 = vst [vmem:[#allocation2 + $0x8] sm:$0xff] %v1462
          %v1469 = vld [vmem:[#allocation5] sm:$0xff]
          %v1471 = vsel %vm1108, %v1469, 0
          %1473 = vmatprep.subr.mxu0 0.0
          %1474 = vmatpush1.msra.mxu0 0.0
          %1475 = vmatprep.subr.mxu0 0.0
          %1476 = vmatpush1.msra.mxu0 0.0
          %1477 = vmatprep.subr.mxu0 0.0
          %1478 = vmatpush1.msra.mxu0 0.0
          %1479 = vmatprep.subr.mxu0 0.0
          %1480 = vmatpush1.msra.mxu0 0.0
          %1481 = vmatprep.subr.mxu0 0.0
          %1482 = vmatpush1.msra.mxu0 0.0
          %1483 = vmatprep.subr.mxu0 0.0
          %1484 = vmatpush1.msra.mxu0 0.0
          %1485 = vmatprep.subr.mxu0 0.0
          %1486 = vmatpush1.msra.mxu0 0.0
          %1487 = vmatprep.subr.mxu0 0.0
          %1488 = vmatpush1.msra.mxu0 0.0
          %1489 = vmatprep.subr.mxu0 0.0
          %1490 = vmatpush1.msra.mxu0 0.0
          %1491 = vmatprep.subr.mxu0 0.0
          %1492 = vmatpush1.msra.mxu0 0.0
          %1493 = vmatprep.subr.mxu0 0.0
          %1494 = vmatpush1.msra.mxu0 0.0
          %1495 = vmatprep.subr.mxu0 0.0
          %1496 = vmatpush1.msra.mxu0 0.0
          %1497 = vmatprep.subr.mxu0 0.0
          %1498 = vmatpush1.msra.mxu0 0.0
          %1499 = vmatprep.subr.mxu0 0.0
          %1500 = vmatpush1.msra.mxu0 0.0
          %1501 = vmatprep.subr.mxu0 0.0
          %1502 = vmatpush1.msra.mxu0 %v983
          %1503 = vmatprep.subr.mxu0 0.0
          %1504 = vmatpush1.msra.mxu0 %v982
          %1505 = vmatprep.subr.mxu0 0.0
          %1506 = vmatpush2.msra.mxu0 0.0
          %1507 = vmatprep.subr.mxu0 0.0
          %1508 = vmatpush2.msra.mxu0 0.0
          %1509 = vmatprep.subr.mxu0 0.0
          %1510 = vmatpush2.msra.mxu0 0.0
          %1511 = vmatprep.subr.mxu0 0.0
          %1512 = vmatpush2.msra.mxu0 0.0
          %1513 = vmatprep.subr.mxu0 0.0
          %1514 = vmatpush2.msra.mxu0 0.0
          %1515 = vmatprep.subr.mxu0 0.0
          %1516 = vmatpush2.msra.mxu0 0.0
          %1517 = vmatprep.subr.mxu0 0.0
          %1518 = vmatpush2.msra.mxu0 0.0
          %1519 = vmatprep.subr.mxu0 0.0
          %1520 = vmatpush2.msra.mxu0 0.0
          %1521 = vmatprep.subr.mxu0 0.0
          %1522 = vmatpush2.msra.mxu0 0.0
          %1523 = vmatprep.subr.mxu0 0.0
          %1524 = vmatpush2.msra.mxu0 0.0
          %1525 = vmatprep.subr.mxu0 0.0
          %1526 = vmatpush2.msra.mxu0 0.0
          %1527 = vmatprep.subr.mxu0 0.0
          %1528 = vmatpush2.msra.mxu0 0.0
          %1529 = vmatprep.subr.mxu0 0.0
          %1530 = vmatpush2.msra.mxu0 0.0
          %1531 = vmatprep.subr.mxu0 0.0
          %1532 = vmatpush2.msra.mxu0 0.0
          %1533 = vmatprep.subr.mxu0 0.0
          %1534 = vmatpush2.msra.mxu0 0.0
          %1535 = vmatprep.subr.mxu0 0.0
          %1536 = vmatpush2.msra.mxu0 0.0
          %1537 = vmatprep.mubr.f32.mxu0 0.0
          %1538 = vmatmul.mubr.f32.gmra.mxu0 %v1471
          %v1539 = vpop.f32.mrf.mxu0
          %v1540 = vadd.f32 %v897, %v1539
          %v1541 = vpop.f32.mrf.mxu0
          %1542 = vdwg.mxu0
          %v1543 = vpack.c.bf16 %v1540, %v1540
          %v1544 = vld [vmem:[%s659] sm:$0xf]
          %v1545 = vld [vmem:[%s659 + $0x4] sm:$0xf]
          %v1546 = vld [vmem:[%s659 + $0x8] sm:$0xf]
          %v1547 = vld [vmem:[%s659 + $0xc] sm:$0xf]
          %v1548 = vld [vmem:[%s659 + $0x10] sm:$0xf]
          %v1549 = vld [vmem:[%s659 + $0x14] sm:$0xf]
          %v1550 = vld [vmem:[%s659 + $0x18] sm:$0xf]
          %v1551 = vld [vmem:[%s659 + $0x1c] sm:$0xf]
          %v1552 = vld [vmem:[%s659 + $0x20] sm:$0xf]
          %v1553 = vld [vmem:[%s659 + $0x24] sm:$0xf]
          %v1554 = vld [vmem:[%s659 + $0x28] sm:$0xf]
          %v1555 = vld [vmem:[%s659 + $0x2c] sm:$0xf]
          %v1556 = vld [vmem:[%s659 + $0x30] sm:$0xf]
          %v1557 = vld [vmem:[%s659 + $0x34] sm:$0xf]
          %v1558 = vld [vmem:[%s659 + $0x38] sm:$0xf]
          %v1559 = vld [vmem:[%s659 + $0x3c] sm:$0xf]
          %v1560 = vld [vmem:[%s776] sm:$0x1]
          %v1562 = vlaneseq
          %v1563 = vshrl.u32 %v1562, 7
          %v1564 = vsub.s32 0, %v1563
          %v1565 = vrot.slane %v1560, %v1564
          %v1583 = vunpack.c.l.b16 %v1544
          %v1584 = vunpack.c.l.b16 %v1545
          %v1585 = vunpack.c.l.b16 %v1546
          %v1586 = vunpack.c.l.b16 %v1547
          %v1587 = vunpack.c.l.b16 %v1548
          %v1588 = vunpack.c.l.b16 %v1549
          %v1589 = vunpack.c.l.b16 %v1550
          %v1590 = vunpack.c.l.b16 %v1551
          %v1591 = vunpack.c.l.b16 %v1552
          %v1592 = vunpack.c.l.b16 %v1553
          %v1593 = vunpack.c.l.b16 %v1554
          %v1594 = vunpack.c.l.b16 %v1555
          %v1595 = vunpack.c.l.b16 %v1556
          %v1596 = vunpack.c.l.b16 %v1557
          %v1597 = vunpack.c.l.b16 %v1558
          %v1598 = vunpack.c.l.b16 %v1559
          %v1599 = vpack.c.b16 %v1584, %v1583
          %v1600 = vpack.c.b16 %v1586, %v1585
          %v1601 = vpack.c.b16 %v1588, %v1587
          %v1602 = vpack.c.b16 %v1590, %v1589
          %v1603 = vpack.c.b16 %v1592, %v1591
          %v1604 = vpack.c.b16 %v1594, %v1593
          %v1605 = vpack.c.b16 %v1596, %v1595
          %v1606 = vpack.c.b16 %v1598, %v1597
          %1615 = vmatprep.subr.bf16.mxu0 0
          %1616 = vmatpush1.bf16.msra.mxu0 %v1606
          %1617 = vmatprep.subr.bf16.mxu0 0
          %1618 = vmatpush1.bf16.msra.mxu0 %v1605
          %1619 = vmatprep.subr.bf16.mxu0 0
          %1620 = vmatpush1.bf16.msra.mxu0 %v1604
          %1621 = vmatprep.subr.bf16.mxu0 0
          %1622 = vmatpush1.bf16.msra.mxu0 %v1603
          %1623 = vmatprep.subr.bf16.mxu0 0
          %1624 = vmatpush1.bf16.msra.mxu0 %v1602
          %1625 = vmatprep.subr.bf16.mxu0 0
          %1626 = vmatpush1.bf16.msra.mxu0 %v1601
          %1627 = vmatprep.subr.bf16.mxu0 0
          %1628 = vmatpush1.bf16.msra.mxu0 %v1600
          %1629 = vmatprep.subr.bf16.mxu0 0
          %1630 = vmatpush1.bf16.msra.mxu0 %v1599
          %1631 = vmatprep.subr.bf16.mxu0 0
          %1632 = vmatpush2.bf16.msra.mxu0 0
          %1633 = vmatprep.subr.bf16.mxu0 0
          %1634 = vmatpush2.bf16.msra.mxu0 0
          %1635 = vmatprep.subr.bf16.mxu0 0
          %1636 = vmatpush2.bf16.msra.mxu0 0
          %1637 = vmatprep.subr.bf16.mxu0 0
          %1638 = vmatpush2.bf16.msra.mxu0 0
          %1639 = vmatprep.subr.bf16.mxu0 0
          %1640 = vmatpush2.bf16.msra.mxu0 0
          %1641 = vmatprep.subr.bf16.mxu0 0
          %1642 = vmatpush2.bf16.msra.mxu0 0
          %1643 = vmatprep.subr.bf16.mxu0 0
          %1644 = vmatpush2.bf16.msra.mxu0 0
          %1645 = vmatprep.subr.bf16.mxu0 0
          %1646 = vmatpush2.bf16.msra.mxu0 0
          %1647 = vmatprep.mubr.bf16.mxu0 0
          %1648 = vmatmul.mubr.bf16.gmra.mxu0 %v1543
          %v1649 = vpop.f32.mrf.mxu0
          %v1650 = vadd.f32 %v1565, %v1649
          %v1651 = vpop.f32.mrf.mxu0
          %v1652 = vpop.f32.mrf.mxu0
          %v1653 = vpop.f32.mrf.mxu0
          %1654 = vdwg.mxu0
          %v1655 = vmax.f32 %v1650, 0.0
          %v1656 = vpack.c.bf16 %v1655, %v1655
          %v1657 = vld [vmem:[%s668] sm:$0xf]
          %v1658 = vld [vmem:[%s668 + $0x4] sm:$0xf]
          %v1659 = vld [vmem:[%s668 + $0x8] sm:$0xf]
          %v1660 = vld [vmem:[%s668 + $0xc] sm:$0xf]
          %v1661 = vld [vmem:[%s668 + $0x10] sm:$0xf]
          %v1662 = vld [vmem:[%s668 + $0x14] sm:$0xf]
          %v1663 = vld [vmem:[%s668 + $0x18] sm:$0xf]
          %v1664 = vld [vmem:[%s668 + $0x1c] sm:$0xf]
          %v1665 = vld [vmem:[%s668 + $0x20] sm:$0xf]
          %v1666 = vld [vmem:[%s668 + $0x24] sm:$0xf]
          %v1667 = vld [vmem:[%s668 + $0x28] sm:$0xf]
          %v1668 = vld [vmem:[%s668 + $0x2c] sm:$0xf]
          %v1669 = vld [vmem:[%s668 + $0x30] sm:$0xf]
          %v1670 = vld [vmem:[%s668 + $0x34] sm:$0xf]
          %v1671 = vld [vmem:[%s668 + $0x38] sm:$0xf]
          %v1672 = vld [vmem:[%s668 + $0x3c] sm:$0xf]
          %v1673 = vld [vmem:[%s779] sm:$0x1]
          %v1675 = vlaneseq
          %v1676 = vshrl.u32 %v1675, 7
          %v1677 = vsub.s32 0, %v1676
          %v1678 = vrot.slane %v1673, %v1677
          %v1696 = vunpack.c.l.b16 %v1657
          %v1697 = vunpack.c.l.b16 %v1658
          %v1698 = vunpack.c.l.b16 %v1659
          %v1699 = vunpack.c.l.b16 %v1660
          %v1700 = vunpack.c.l.b16 %v1661
          %v1701 = vunpack.c.l.b16 %v1662
          %v1702 = vunpack.c.l.b16 %v1663
          %v1703 = vunpack.c.l.b16 %v1664
          %v1704 = vunpack.c.l.b16 %v1665
          %v1705 = vunpack.c.l.b16 %v1666
          %v1706 = vunpack.c.l.b16 %v1667
          %v1707 = vunpack.c.l.b16 %v1668
          %v1708 = vunpack.c.l.b16 %v1669
          %v1709 = vunpack.c.l.b16 %v1670
          %v1710 = vunpack.c.l.b16 %v1671
          %v1711 = vunpack.c.l.b16 %v1672
          %v1712 = vpack.c.b16 %v1697, %v1696
          %v1713 = vpack.c.b16 %v1699, %v1698
          %v1714 = vpack.c.b16 %v1701, %v1700
          %v1715 = vpack.c.b16 %v1703, %v1702
          %v1716 = vpack.c.b16 %v1705, %v1704
          %v1717 = vpack.c.b16 %v1707, %v1706
          %v1718 = vpack.c.b16 %v1709, %v1708
          %v1719 = vpack.c.b16 %v1711, %v1710
          %1728 = vmatprep.subr.bf16.mxu0 0
          %1729 = vmatpush1.bf16.msra.mxu0 %v1719
          %1730 = vmatprep.subr.bf16.mxu0 0
          %1731 = vmatpush1.bf16.msra.mxu0 %v1718
          %1732 = vmatprep.subr.bf16.mxu0 0
          %1733 = vmatpush1.bf16.msra.mxu0 %v1717
          %1734 = vmatprep.subr.bf16.mxu0 0
          %1735 = vmatpush1.bf16.msra.mxu0 %v1716
          %1736 = vmatprep.subr.bf16.mxu0 0
          %1737 = vmatpush1.bf16.msra.mxu0 %v1715
          %1738 = vmatprep.subr.bf16.mxu0 0
          %1739 = vmatpush1.bf16.msra.mxu0 %v1714
          %1740 = vmatprep.subr.bf16.mxu0 0
          %1741 = vmatpush1.bf16.msra.mxu0 %v1713
          %1742 = vmatprep.subr.bf16.mxu0 0
          %1743 = vmatpush1.bf16.msra.mxu0 %v1712
          %1744 = vmatprep.subr.bf16.mxu0 0
          %1745 = vmatpush2.bf16.msra.mxu0 0
          %1746 = vmatprep.subr.bf16.mxu0 0
          %1747 = vmatpush2.bf16.msra.mxu0 0
          %1748 = vmatprep.subr.bf16.mxu0 0
          %1749 = vmatpush2.bf16.msra.mxu0 0
          %1750 = vmatprep.subr.bf16.mxu0 0
          %1751 = vmatpush2.bf16.msra.mxu0 0
          %1752 = vmatprep.subr.bf16.mxu0 0
          %1753 = vmatpush2.bf16.msra.mxu0 0
          %1754 = vmatprep.subr.bf16.mxu0 0
          %1755 = vmatpush2.bf16.msra.mxu0 0
          %1756 = vmatprep.subr.bf16.mxu0 0
          %1757 = vmatpush2.bf16.msra.mxu0 0
          %1758 = vmatprep.subr.bf16.mxu0 0
          %1759 = vmatpush2.bf16.msra.mxu0 0
          %1760 = vmatprep.mubr.bf16.mxu0 0
          %1761 = vmatmul.mubr.bf16.gmra.mxu0 %v1656
          %v1762 = vpop.f32.mrf.mxu0
          %v1763 = vadd.f32 %v1678, %v1762
          %v1764 = vpop.f32.mrf.mxu0
          %v1765 = vpop.f32.mrf.mxu0
          %v1766 = vpop.f32.mrf.mxu0
          %1767 = vdwg.mxu0
          %v1768 = vmax.f32 %v1763, 0.0
          %1769 = vst [vmem:[#allocation3] sm:$0xff] %v1768
        $region112: #{gnn_node_virtualnode_forward.1} parent=91 // pred_fallthru
          _
        // Predicated region
        $region113: #{gnn_node_virtualnode_forward.1} parent=91 // pred_check
          %p1770 = pneg %p781
        $region114: #{gnn_node_virtualnode_forward.1} parent=91 // pred_check_branch
          %1772 = sbr.rel (%p1770) target = $region116
        $region115: #{gnn_node_virtualnode_forward.1} parent=91 // pred_region
          %1773 = vst [vmem:[#allocation14] sm:$0xff] %v1455
          %1774 = vst [vmem:[#allocation14 + $0x8] sm:$0xff] %v1458
        $region116: #{gnn_node_virtualnode_forward.1} parent=91 // pred_fallthru
          _
        // Predicated region
        $region117: #{gnn_node_virtualnode_forward.1} parent=91 // pred_check
          %p1775 = pneg %p482
        $region118: #{gnn_node_virtualnode_forward.1} parent=91 // pred_check_branch
          %1777 = sbr.rel (%p1775) target = $region120
        $region119: #{gnn_node_virtualnode_forward.1} parent=91 // pred_region
          %s1779 = ssub.s32 256, 256
          %1780 = vsyncadd [#allocation10], %s1779
          %s1781 = sshll.u32 [#allocation14], 4
          %s1782 = int_to_ptr.vmem [resolvable:$true] %s1781
          %1787 = dma.vmem_to_hbm [thread:$0]  %s1782, 256, %s18, [#allocation10], 128, 128, 8
        $region120: #{gnn_node_virtualnode_forward.1} parent=91 // pred_fallthru
          _
        // Predicated region
        $region121: #{gnn_node_virtualnode_forward.1} parent=91 // pred_check
          %p1788 = pneg %p482
        $region122: #{gnn_node_virtualnode_forward.1} parent=91 // pred_check_branch
          %1790 = sbr.rel (%p1788) target = $region124
        $region123: #{gnn_node_virtualnode_forward.1} parent=91 // pred_region
          %1791 = dma.done [#allocation10], 256
        $region124: #{gnn_node_virtualnode_forward.1} parent=91 // pred_fallthru
          _
      $region92: #{gnn_node_virtualnode_forward.1} parent=5 // pred_fallthru
        _
      %p1792 = scmp.le.s32.totalorder 2, %s31
      // Predicated region
      $region125: #{gnn_node_virtualnode_forward.1} parent=5 // pred_check
        %p1793 = pneg %p1792
      $region126: #{gnn_node_virtualnode_forward.1} parent=5 // pred_check_branch
        %1795 = sbr.rel (%p1793) target = $region128
      $region127: #{gnn_node_virtualnode_forward.1} parent=5 // pred_region
        %s1796 = ssub.s32 %s31, 2
      $region128: #{gnn_node_virtualnode_forward.1} parent=5 // pred_fallthru
        _
    $region6: #{gnn_node_virtualnode_forward.1} parent=1 // loop_footer
      %s35 = sadd.s32 1, %s31
    $region7: #{gnn_node_virtualnode_forward.1} parent=1 // loop_footer_branch
      %30 = sbr.rel target = $region3
    $region8: #{gnn_node_virtualnode_forward.1} parent=1 // loop_exit
      _
    %1797 = vsyncpa [#allocation9], 1
    %s1798 = scalar_lea.sflag [#allocation9], 1
    %1799 = vsyncpa %s1798, 1
    %1800 = vsyncpa [#allocation12], 1
    %s1801 = scalar_lea.sflag [#allocation12], 1
    %1802 = vsyncpa %s1801, 1
    %1803 = vsyncpa [#allocation10], 1
    %s1804 = scalar_lea.sflag [#allocation10], 1
    %1805 = vsyncpa %s1804, 1

</llo_original>
